<compile_context>
chip_gen: v7x
topology: tpu7x:2x2x1
jax: 0.10.0
libtpu: 0.0.40
codegen_flags: <defaults>
</compile_context>

<pallas_src>
import functools

import jax
import jax.numpy as jnp
from jax.experimental import pallas as pl
from jax.experimental.pallas import tpu as pltpu

K = 7     # conv kernel size
PAD = 3   # "same" padding for k=7


def _round_up(v, m):
    return (v + m - 1) // m * m


def _build_conv_matrices(weight, H, W):
    """Banded / shift matrices so the 7x7 conv runs as MXU matmuls.

    mwc[dh] : (2W, W)  combined band matrix for both input channels:
              mwc[dh, c*W + wi, wo] = weight[0, c, dh, wi - wo + PAD]
              (zero outside the 7-tap band; absorbs zero-padding along W)
    rh[dh]  : (H, H)   0/1 row-shift matrix:
              rh[dh, g, h] = 1  iff  h == g + dh - PAD
              (empty rows absorb zero-padding along H)
    """
    w = weight.reshape(2, K, K).astype(jnp.float32)

    wi = jnp.arange(W)[:, None]                 # input column
    wo = jnp.arange(W)[None, :]                 # output column
    dw = wi - wo + PAD                          # (W, W) tap index
    valid = (dw >= 0) & (dw < K)
    taps = w[:, :, jnp.clip(dw, 0, K - 1)]      # (2, K, W, W)
    mw = jnp.where(valid[None, None], taps, 0.0)
    mwc = jnp.concatenate([mw[0], mw[1]], axis=1)   # (K, 2W, W)

    g = jnp.arange(H)[:, None]                  # output row
    h = jnp.arange(H)[None, :]                  # input row
    dh = jnp.arange(K)[:, None, None]
    rh = (h == g + dh - PAD).astype(jnp.float32)    # (K, H, H)
    return mwc, rh


def spatial_attention_kernel(bias_ref, mwc_ref, rh_ref, x_ref, o_ref, *, C, TB):
    bias = bias_ref[0]                           # scalar from SMEM
    inv_c = 1.0 / C
    for b in range(TB):                          # static unroll over this block's images
        # ---- channel mean / max (single pass over C, pure VPU) --------------
        # For bf16 inputs the cast keeps full f32 accuracy in the reduction
        # (matches the f32 PyTorch reference); for f32 inputs it is a no-op.
        x0 = x_ref[b, 0].astype(jnp.float32)
        acc_sum = x0
        acc_max = x0
        for c in range(1, C):
            xc = x_ref[b, c].astype(jnp.float32)
            acc_sum = acc_sum + xc
            acc_max = jnp.maximum(acc_max, xc)
        avg = acc_sum * inv_c

        # One lane-concat per image; both channels' W-taps are then applied by
        # a single (H, 2W) @ (2W, W) MXU matmul per dh (halves MXU weight loads).
        am = jnp.concatenate([avg, acc_max], axis=-1)        # (H, 2W)

        # ---- 7x7 conv as banded matmuls on the MXU -------------------------
        conv = None
        for dh in range(K):
            t = jnp.dot(am, mwc_ref[dh], preferred_element_type=jnp.float32)
            r = jnp.dot(rh_ref[dh], t, preferred_element_type=jnp.float32)
            conv = r if conv is None else conv + r

        o_ref[b, 0] = jax.nn.sigmoid(conv + bias).astype(o_ref.dtype)


def spatial_attention(x, weight, bias, *, images_per_step=None):
    """x: (B, C, H, W); weight: (1, 2, 7, 7); bias: (1,)  ->  (B, 1, H, W)."""
    B, C, H, W = x.shape

    # Per-image VMEM footprint, accounting for (8, 128) tile padding.
    hp, wp = _round_up(H, 8), _round_up(W, 128)
    img_bytes = (C + 1) * hp * wp * 4            # input planes + output plane

    tb = images_per_step
    if tb is None:
        tb = 1
        for cand in range(1, min(B, 8) + 1):     # cap: static unroll + VMEM budget
            if B % cand == 0 and 2 * cand * img_bytes <= (8 << 20):
                tb = cand
    assert B % tb == 0, "images_per_step must divide the batch size"

    mwc, rh = _build_conv_matrices(weight, H, W)
    bias_arr = bias.reshape(1).astype(jnp.float32)

    param_bytes = (K * _round_up(2 * W, 8) * wp
                   + K * _round_up(H, 8) * _round_up(H, 128)) * 4
    vmem_limit = int(min(max(2 * (tb * img_bytes + param_bytes) + (2 << 20),
                             8 << 20),
                         48 << 20))              # headroom under v7x's 64 MiB

    kernel = functools.partial(spatial_attention_kernel, C=C, TB=tb)

    return pl.pallas_call(
        kernel,
        out_shape=jax.ShapeDtypeStruct((B, 1, H, W), x.dtype),
        grid=(B // tb,),
        in_specs=[
            pl.BlockSpec(memory_space=pltpu.MemorySpace.SMEM),       # conv bias (scalar)
            pl.BlockSpec((K, 2 * W, W), lambda i: (0, 0, 0)),        # combined W-band matrices
            pl.BlockSpec((K, H, H), lambda i: (0, 0, 0)),            # H shift matrices
            pl.BlockSpec((tb, C, H, W), lambda i: (i, 0, 0, 0)),     # input images
        ],
        out_specs=pl.BlockSpec((tb, 1, H, W), lambda i: (i, 0, 0, 0)),
        compiler_params=pltpu.CompilerParams(
            dimension_semantics=("parallel",),    # batch blocks are independent (v7x: 2 TCs)
            vmem_limit_bytes=vmem_limit),
    )(bias_arr, mwc, rh, x)


def spatial_attention_ref(x, weight, bias):
    """Pure-JAX reference matching the PyTorch forward exactly."""
    avg = jnp.mean(x, axis=1, keepdims=True)
    mx = jnp.max(x, axis=1, keepdims=True)
    out = jnp.concatenate([avg, mx], axis=1)
    y = jax.lax.conv_general_dilated(
        out, weight, window_strides=(1, 1),
        padding=((PAD, PAD), (PAD, PAD)),
        dimension_numbers=("NCHW", "OIHW", "NCHW"))
    y = y + bias.reshape(1, -1, 1, 1)
    return jax.nn.sigmoid(y)


if __name__ == "__main__":
    key = jax.random.PRNGKey(0)
    k_x, k_w, k_b = jax.random.split(key, 3)

    B, C, H, W = 2, 4, 16, 16
    x = jax.random.normal(k_x, (B, C, H, W), dtype=jnp.float32)

    # Deterministic Conv2d(2 -> 1, k=7) params, PyTorch-style uniform init.
    fan_in = 2 * K * K
    bound = 1.0 / (fan_in ** 0.5)
    weight = jax.random.uniform(k_w, (1, 2, K, K), jnp.float32, -bound, bound)
    bias = jax.random.uniform(k_b, (1,), jnp.float32, -bound, bound)

    out = jax.block_until_ready(spatial_attention(x, weight, bias))
    ref = spatial_attention_ref(x, weight, bias)

    assert out.shape == (B, 1, H, W)
    # MXU f32 matmuls may execute as bf16 passes at default precision, so allow
    # a small tolerance (real indexing/semantics bugs would be O(0.1) or more).
    assert jnp.allclose(out, ref, atol=1e-2, rtol=1e-2), "mismatch vs reference"

    print("KERNEL_OK")
</pallas_src>

<mosaic_0001>
module attributes {stable_mosaic.version = 11 : i64} {
  func.func @spatial_attention_kernel(%arg0: i32, %arg1: memref<1xf32, #tpu.memory_space<smem>>, %arg2: memref<7x32x16xf32, #tpu.memory_space<vmem>>, %arg3: memref<7x16x16xf32, #tpu.memory_space<vmem>>, %arg4: memref<2x4x16x16xf32, #tpu.memory_space<vmem>>, %arg5: memref<2x1x16x16xf32, #tpu.memory_space<vmem>>) attributes {dimension_semantics = [#tpu.dimension_semantics<parallel>], iteration_bounds = array<i64: 1>, scalar_prefetch = 0 : i64, scratch_operands = 0 : i64, tpu.core_type = #tpu.core_type<tc>, window_params = [{transform_indices = @transform_0, window_bounds = array<i64: 1>}, {pipeline_mode = #tpu.pipeline_mode<synchronous>, transform_indices = @transform_1, window_bounds = array<i64: 7, 32, 16>}, {pipeline_mode = #tpu.pipeline_mode<synchronous>, transform_indices = @transform_2, window_bounds = array<i64: 7, 16, 16>}, {transform_indices = @transform_3, window_bounds = array<i64: 2, 4, 16, 16>}, {transform_indices = @transform_4, window_bounds = array<i64: 2, 1, 16, 16>}]} {
    %c0 = arith.constant 0 : index
    %0 = memref.load %arg1[%c0] : memref<1xf32, #tpu.memory_space<smem>>
    %c0_0 = arith.constant 0 : index
    %c0_1 = arith.constant 0 : index
    %c0_2 = arith.constant 0 : index
    %c0_3 = arith.constant 0 : index
    %1 = vector.load %arg4[%c0_0, %c0_1, %c0_2, %c0_3] : memref<2x4x16x16xf32, #tpu.memory_space<vmem>>, vector<1x1x16x16xf32>
    %2 = vector.shape_cast %1 : vector<1x1x16x16xf32> to vector<16x16xf32>
    %c0_4 = arith.constant 0 : index
    %c1 = arith.constant 1 : index
    %c0_5 = arith.constant 0 : index
    %c0_6 = arith.constant 0 : index
    %3 = vector.load %arg4[%c0_4, %c1, %c0_5, %c0_6] : memref<2x4x16x16xf32, #tpu.memory_space<vmem>>, vector<1x1x16x16xf32>
    %4 = vector.shape_cast %3 : vector<1x1x16x16xf32> to vector<16x16xf32>
    %5 = arith.addf %2, %4 : vector<16x16xf32>
    %6 = arith.maximumf %2, %4 : vector<16x16xf32>
    %c0_7 = arith.constant 0 : index
    %c2 = arith.constant 2 : index
    %c0_8 = arith.constant 0 : index
    %c0_9 = arith.constant 0 : index
    %7 = vector.load %arg4[%c0_7, %c2, %c0_8, %c0_9] : memref<2x4x16x16xf32, #tpu.memory_space<vmem>>, vector<1x1x16x16xf32>
    %8 = vector.shape_cast %7 : vector<1x1x16x16xf32> to vector<16x16xf32>
    %9 = arith.addf %5, %8 : vector<16x16xf32>
    %10 = arith.maximumf %6, %8 : vector<16x16xf32>
    %c0_10 = arith.constant 0 : index
    %c3 = arith.constant 3 : index
    %c0_11 = arith.constant 0 : index
    %c0_12 = arith.constant 0 : index
    %11 = vector.load %arg4[%c0_10, %c3, %c0_11, %c0_12] : memref<2x4x16x16xf32, #tpu.memory_space<vmem>>, vector<1x1x16x16xf32>
    %12 = vector.shape_cast %11 : vector<1x1x16x16xf32> to vector<16x16xf32>
    %13 = arith.addf %9, %12 : vector<16x16xf32>
    %14 = arith.maximumf %10, %12 : vector<16x16xf32>
    %cst = arith.constant 2.500000e-01 : f32
    %15 = vector.broadcast %cst : f32 to vector<16x16xf32>
    %16 = arith.mulf %13, %15 : vector<16x16xf32>
    %17 = tpu.concatenate %16, %14 in 1 : vector<16x16xf32>, vector<16x16xf32> -> vector<16x32xf32>
    %c0_13 = arith.constant 0 : index
    %c0_14 = arith.constant 0 : index
    %c0_15 = arith.constant 0 : index
    %18 = vector.load %arg2[%c0_13, %c0_14, %c0_15] : memref<7x32x16xf32, #tpu.memory_space<vmem>>, vector<1x32x16xf32>
    %19 = vector.shape_cast %18 : vector<1x32x16xf32> to vector<32x16xf32>
    %cst_16 = arith.constant dense<0.000000e+00> : vector<16x16xf32>
    %20 = tpu.matmul %17, %19, %cst_16 {dimension_numbers = #tpu.dot_dimension_numbers<[1], [0], [0], [1], [0, 0, 1, 1], [], []>} : vector<16x32xf32>, vector<32x16xf32>, vector<16x16xf32> -> vector<16x16xf32>
    %c0_17 = arith.constant 0 : index
    %c0_18 = arith.constant 0 : index
    %c0_19 = arith.constant 0 : index
    %21 = vector.load %arg3[%c0_17, %c0_18, %c0_19] : memref<7x16x16xf32, #tpu.memory_space<vmem>>, vector<1x16x16xf32>
    %22 = vector.shape_cast %21 : vector<1x16x16xf32> to vector<16x16xf32>
    %cst_20 = arith.constant dense<0.000000e+00> : vector<16x16xf32>
    %23 = tpu.matmul %22, %20, %cst_20 {dimension_numbers = #tpu.dot_dimension_numbers<[1], [0], [0], [1], [0, 0, 1, 1], [], []>} : vector<16x16xf32>, vector<16x16xf32>, vector<16x16xf32> -> vector<16x16xf32>
    %c1_21 = arith.constant 1 : index
    %c0_22 = arith.constant 0 : index
    %c0_23 = arith.constant 0 : index
    %24 = vector.load %arg2[%c1_21, %c0_22, %c0_23] : memref<7x32x16xf32, #tpu.memory_space<vmem>>, vector<1x32x16xf32>
    %25 = vector.shape_cast %24 : vector<1x32x16xf32> to vector<32x16xf32>
    %cst_24 = arith.constant dense<0.000000e+00> : vector<16x16xf32>
    %26 = tpu.matmul %17, %25, %cst_24 {dimension_numbers = #tpu.dot_dimension_numbers<[1], [0], [0], [1], [0, 0, 1, 1], [], []>} : vector<16x32xf32>, vector<32x16xf32>, vector<16x16xf32> -> vector<16x16xf32>
    %c1_25 = arith.constant 1 : index
    %c0_26 = arith.constant 0 : index
    %c0_27 = arith.constant 0 : index
    %27 = vector.load %arg3[%c1_25, %c0_26, %c0_27] : memref<7x16x16xf32, #tpu.memory_space<vmem>>, vector<1x16x16xf32>
    %28 = vector.shape_cast %27 : vector<1x16x16xf32> to vector<16x16xf32>
    %cst_28 = arith.constant dense<0.000000e+00> : vector<16x16xf32>
    %29 = tpu.matmul %28, %26, %cst_28 {dimension_numbers = #tpu.dot_dimension_numbers<[1], [0], [0], [1], [0, 0, 1, 1], [], []>} : vector<16x16xf32>, vector<16x16xf32>, vector<16x16xf32> -> vector<16x16xf32>
    %30 = arith.addf %23, %29 : vector<16x16xf32>
    %c2_29 = arith.constant 2 : index
    %c0_30 = arith.constant 0 : index
    %c0_31 = arith.constant 0 : index
    %31 = vector.load %arg2[%c2_29, %c0_30, %c0_31] : memref<7x32x16xf32, #tpu.memory_space<vmem>>, vector<1x32x16xf32>
    %32 = vector.shape_cast %31 : vector<1x32x16xf32> to vector<32x16xf32>
    %cst_32 = arith.constant dense<0.000000e+00> : vector<16x16xf32>
    %33 = tpu.matmul %17, %32, %cst_32 {dimension_numbers = #tpu.dot_dimension_numbers<[1], [0], [0], [1], [0, 0, 1, 1], [], []>} : vector<16x32xf32>, vector<32x16xf32>, vector<16x16xf32> -> vector<16x16xf32>
    %c2_33 = arith.constant 2 : index
    %c0_34 = arith.constant 0 : index
    %c0_35 = arith.constant 0 : index
    %34 = vector.load %arg3[%c2_33, %c0_34, %c0_35] : memref<7x16x16xf32, #tpu.memory_space<vmem>>, vector<1x16x16xf32>
    %35 = vector.shape_cast %34 : vector<1x16x16xf32> to vector<16x16xf32>
    %cst_36 = arith.constant dense<0.000000e+00> : vector<16x16xf32>
    %36 = tpu.matmul %35, %33, %cst_36 {dimension_numbers = #tpu.dot_dimension_numbers<[1], [0], [0], [1], [0, 0, 1, 1], [], []>} : vector<16x16xf32>, vector<16x16xf32>, vector<16x16xf32> -> vector<16x16xf32>
    %37 = arith.addf %30, %36 : vector<16x16xf32>
    %c3_37 = arith.constant 3 : index
    %c0_38 = arith.constant 0 : index
    %c0_39 = arith.constant 0 : index
    %38 = vector.load %arg2[%c3_37, %c0_38, %c0_39] : memref<7x32x16xf32, #tpu.memory_space<vmem>>, vector<1x32x16xf32>
    %39 = vector.shape_cast %38 : vector<1x32x16xf32> to vector<32x16xf32>
    %cst_40 = arith.constant dense<0.000000e+00> : vector<16x16xf32>
    %40 = tpu.matmul %17, %39, %cst_40 {dimension_numbers = #tpu.dot_dimension_numbers<[1], [0], [0], [1], [0, 0, 1, 1], [], []>} : vector<16x32xf32>, vector<32x16xf32>, vector<16x16xf32> -> vector<16x16xf32>
    %c3_41 = arith.constant 3 : index
    %c0_42 = arith.constant 0 : index
    %c0_43 = arith.constant 0 : index
    %41 = vector.load %arg3[%c3_41, %c0_42, %c0_43] : memref<7x16x16xf32, #tpu.memory_space<vmem>>, vector<1x16x16xf32>
    %42 = vector.shape_cast %41 : vector<1x16x16xf32> to vector<16x16xf32>
    %cst_44 = arith.constant dense<0.000000e+00> : vector<16x16xf32>
    %43 = tpu.matmul %42, %40, %cst_44 {dimension_numbers = #tpu.dot_dimension_numbers<[1], [0], [0], [1], [0, 0, 1, 1], [], []>} : vector<16x16xf32>, vector<16x16xf32>, vector<16x16xf32> -> vector<16x16xf32>
    %44 = arith.addf %37, %43 : vector<16x16xf32>
    %c4 = arith.constant 4 : index
    %c0_45 = arith.constant 0 : index
    %c0_46 = arith.constant 0 : index
    %45 = vector.load %arg2[%c4, %c0_45, %c0_46] : memref<7x32x16xf32, #tpu.memory_space<vmem>>, vector<1x32x16xf32>
    %46 = vector.shape_cast %45 : vector<1x32x16xf32> to vector<32x16xf32>
    %cst_47 = arith.constant dense<0.000000e+00> : vector<16x16xf32>
    %47 = tpu.matmul %17, %46, %cst_47 {dimension_numbers = #tpu.dot_dimension_numbers<[1], [0], [0], [1], [0, 0, 1, 1], [], []>} : vector<16x32xf32>, vector<32x16xf32>, vector<16x16xf32> -> vector<16x16xf32>
    %c4_48 = arith.constant 4 : index
    %c0_49 = arith.constant 0 : index
    %c0_50 = arith.constant 0 : index
    %48 = vector.load %arg3[%c4_48, %c0_49, %c0_50] : memref<7x16x16xf32, #tpu.memory_space<vmem>>, vector<1x16x16xf32>
    %49 = vector.shape_cast %48 : vector<1x16x16xf32> to vector<16x16xf32>
    %cst_51 = arith.constant dense<0.000000e+00> : vector<16x16xf32>
    %50 = tpu.matmul %49, %47, %cst_51 {dimension_numbers = #tpu.dot_dimension_numbers<[1], [0], [0], [1], [0, 0, 1, 1], [], []>} : vector<16x16xf32>, vector<16x16xf32>, vector<16x16xf32> -> vector<16x16xf32>
    %51 = arith.addf %44, %50 : vector<16x16xf32>
    %c5 = arith.constant 5 : index
    %c0_52 = arith.constant 0 : index
    %c0_53 = arith.constant 0 : index
    %52 = vector.load %arg2[%c5, %c0_52, %c0_53] : memref<7x32x16xf32, #tpu.memory_space<vmem>>, vector<1x32x16xf32>
    %53 = vector.shape_cast %52 : vector<1x32x16xf32> to vector<32x16xf32>
    %cst_54 = arith.constant dense<0.000000e+00> : vector<16x16xf32>
    %54 = tpu.matmul %17, %53, %cst_54 {dimension_numbers = #tpu.dot_dimension_numbers<[1], [0], [0], [1], [0, 0, 1, 1], [], []>} : vector<16x32xf32>, vector<32x16xf32>, vector<16x16xf32> -> vector<16x16xf32>
    %c5_55 = arith.constant 5 : index
    %c0_56 = arith.constant 0 : index
    %c0_57 = arith.constant 0 : index
    %55 = vector.load %arg3[%c5_55, %c0_56, %c0_57] : memref<7x16x16xf32, #tpu.memory_space<vmem>>, vector<1x16x16xf32>
    %56 = vector.shape_cast %55 : vector<1x16x16xf32> to vector<16x16xf32>
    %cst_58 = arith.constant dense<0.000000e+00> : vector<16x16xf32>
    %57 = tpu.matmul %56, %54, %cst_58 {dimension_numbers = #tpu.dot_dimension_numbers<[1], [0], [0], [1], [0, 0, 1, 1], [], []>} : vector<16x16xf32>, vector<16x16xf32>, vector<16x16xf32> -> vector<16x16xf32>
    %58 = arith.addf %51, %57 : vector<16x16xf32>
    %c6 = arith.constant 6 : index
    %c0_59 = arith.constant 0 : index
    %c0_60 = arith.constant 0 : index
    %59 = vector.load %arg2[%c6, %c0_59, %c0_60] : memref<7x32x16xf32, #tpu.memory_space<vmem>>, vector<1x32x16xf32>
    %60 = vector.shape_cast %59 : vector<1x32x16xf32> to vector<32x16xf32>
    %cst_61 = arith.constant dense<0.000000e+00> : vector<16x16xf32>
    %61 = tpu.matmul %17, %60, %cst_61 {dimension_numbers = #tpu.dot_dimension_numbers<[1], [0], [0], [1], [0, 0, 1, 1], [], []>} : vector<16x32xf32>, vector<32x16xf32>, vector<16x16xf32> -> vector<16x16xf32>
    %c6_62 = arith.constant 6 : index
    %c0_63 = arith.constant 0 : index
    %c0_64 = arith.constant 0 : index
    %62 = vector.load %arg3[%c6_62, %c0_63, %c0_64] : memref<7x16x16xf32, #tpu.memory_space<vmem>>, vector<1x16x16xf32>
    %63 = vector.shape_cast %62 : vector<1x16x16xf32> to vector<16x16xf32>
    %cst_65 = arith.constant dense<0.000000e+00> : vector<16x16xf32>
    %64 = tpu.matmul %63, %61, %cst_65 {dimension_numbers = #tpu.dot_dimension_numbers<[1], [0], [0], [1], [0, 0, 1, 1], [], []>} : vector<16x16xf32>, vector<16x16xf32>, vector<16x16xf32> -> vector<16x16xf32>
    %65 = arith.addf %58, %64 : vector<16x16xf32>
    %66 = vector.broadcast %0 : f32 to vector<16x16xf32>
    %67 = arith.addf %65, %66 : vector<16x16xf32>
    %68 = arith.negf %67 : vector<16x16xf32>
    %69 = math.exp %68 : vector<16x16xf32>
    %cst_66 = arith.constant 1.000000e+00 : f32
    %70 = vector.broadcast %cst_66 : f32 to vector<16x16xf32>
    %71 = arith.addf %70, %69 : vector<16x16xf32>
    %72 = arith.divf %70, %71 : vector<16x16xf32>
    %c0_67 = arith.constant 0 : index
    %c0_68 = arith.constant 0 : index
    %c0_69 = arith.constant 0 : index
    %c0_70 = arith.constant 0 : index
    %73 = vector.load %arg5[%c0_67, %c0_68, %c0_69, %c0_70] : memref<2x1x16x16xf32, #tpu.memory_space<vmem>>, vector<1x1x16x16xf32>
    %74 = vector.shape_cast %73 : vector<1x1x16x16xf32> to vector<16x16xf32>
    %75 = vector.shape_cast %72 : vector<16x16xf32> to vector<1x1x16x16xf32>
    tpu.vector_store %arg5[%c0_67, %c0_68, %c0_69, %c0_70], %75 {strides = array<i32>} : memref<2x1x16x16xf32, #tpu.memory_space<vmem>>, vector<1x1x16x16xf32>,
    %c1_71 = arith.constant 1 : index
    %c0_72 = arith.constant 0 : index
    %c0_73 = arith.constant 0 : index
    %c0_74 = arith.constant 0 : index
    %76 = vector.load %arg4[%c1_71, %c0_72, %c0_73, %c0_74] : memref<2x4x16x16xf32, #tpu.memory_space<vmem>>, vector<1x1x16x16xf32>
    %77 = vector.shape_cast %76 : vector<1x1x16x16xf32> to vector<16x16xf32>
    %c1_75 = arith.constant 1 : index
    %c1_76 = arith.constant 1 : index
    %c0_77 = arith.constant 0 : index
    %c0_78 = arith.constant 0 : index
    %78 = vector.load %arg4[%c1_75, %c1_76, %c0_77, %c0_78] : memref<2x4x16x16xf32, #tpu.memory_space<vmem>>, vector<1x1x16x16xf32>
    %79 = vector.shape_cast %78 : vector<1x1x16x16xf32> to vector<16x16xf32>
    %80 = arith.addf %77, %79 : vector<16x16xf32>
    %81 = arith.maximumf %77, %79 : vector<16x16xf32>
    %c1_79 = arith.constant 1 : index
    %c2_80 = arith.constant 2 : index
    %c0_81 = arith.constant 0 : index
    %c0_82 = arith.constant 0 : index
    %82 = vector.load %arg4[%c1_79, %c2_80, %c0_81, %c0_82] : memref<2x4x16x16xf32, #tpu.memory_space<vmem>>, vector<1x1x16x16xf32>
    %83 = vector.shape_cast %82 : vector<1x1x16x16xf32> to vector<16x16xf32>
    %84 = arith.addf %80, %83 : vector<16x16xf32>
    %85 = arith.maximumf %81, %83 : vector<16x16xf32>
    %c1_83 = arith.constant 1 : index
    %c3_84 = arith.constant 3 : index
    %c0_85 = arith.constant 0 : index
    %c0_86 = arith.constant 0 : index
    %86 = vector.load %arg4[%c1_83, %c3_84, %c0_85, %c0_86] : memref<2x4x16x16xf32, #tpu.memory_space<vmem>>, vector<1x1x16x16xf32>
    %87 = vector.shape_cast %86 : vector<1x1x16x16xf32> to vector<16x16xf32>
    %88 = arith.addf %84, %87 : vector<16x16xf32>
    %89 = arith.maximumf %85, %87 : vector<16x16xf32>
    %cst_87 = arith.constant 2.500000e-01 : f32
    %90 = vector.broadcast %cst_87 : f32 to vector<16x16xf32>
    %91 = arith.mulf %88, %90 : vector<16x16xf32>
    %92 = tpu.concatenate %91, %89 in 1 : vector<16x16xf32>, vector<16x16xf32> -> vector<16x32xf32>
    %c0_88 = arith.constant 0 : index
    %c0_89 = arith.constant 0 : index
    %c0_90 = arith.constant 0 : index
    %93 = vector.load %arg2[%c0_88, %c0_89, %c0_90] : memref<7x32x16xf32, #tpu.memory_space<vmem>>, vector<1x32x16xf32>
    %94 = vector.shape_cast %93 : vector<1x32x16xf32> to vector<32x16xf32>
    %cst_91 = arith.constant dense<0.000000e+00> : vector<16x16xf32>
    %95 = tpu.matmul %92, %94, %cst_91 {dimension_numbers = #tpu.dot_dimension_numbers<[1], [0], [0], [1], [0, 0, 1, 1], [], []>} : vector<16x32xf32>, vector<32x16xf32>, vector<16x16xf32> -> vector<16x16xf32>
    %c0_92 = arith.constant 0 : index
    %c0_93 = arith.constant 0 : index
    %c0_94 = arith.constant 0 : index
    %96 = vector.load %arg3[%c0_92, %c0_93, %c0_94] : memref<7x16x16xf32, #tpu.memory_space<vmem>>, vector<1x16x16xf32>
    %97 = vector.shape_cast %96 : vector<1x16x16xf32> to vector<16x16xf32>
    %cst_95 = arith.constant dense<0.000000e+00> : vector<16x16xf32>
    %98 = tpu.matmul %97, %95, %cst_95 {dimension_numbers = #tpu.dot_dimension_numbers<[1], [0], [0], [1], [0, 0, 1, 1], [], []>} : vector<16x16xf32>, vector<16x16xf32>, vector<16x16xf32> -> vector<16x16xf32>
    %c1_96 = arith.constant 1 : index
    %c0_97 = arith.constant 0 : index
    %c0_98 = arith.constant 0 : index
    %99 = vector.load %arg2[%c1_96, %c0_97, %c0_98] : memref<7x32x16xf32, #tpu.memory_space<vmem>>, vector<1x32x16xf32>
    %100 = vector.shape_cast %99 : vector<1x32x16xf32> to vector<32x16xf32>
    %cst_99 = arith.constant dense<0.000000e+00> : vector<16x16xf32>
    %101 = tpu.matmul %92, %100, %cst_99 {dimension_numbers = #tpu.dot_dimension_numbers<[1], [0], [0], [1], [0, 0, 1, 1], [], []>} : vector<16x32xf32>, vector<32x16xf32>, vector<16x16xf32> -> vector<16x16xf32>
    %c1_100 = arith.constant 1 : index
    %c0_101 = arith.constant 0 : index
    %c0_102 = arith.constant 0 : index
    %102 = vector.load %arg3[%c1_100, %c0_101, %c0_102] : memref<7x16x16xf32, #tpu.memory_space<vmem>>, vector<1x16x16xf32>
    %103 = vector.shape_cast %102 : vector<1x16x16xf32> to vector<16x16xf32>
    %cst_103 = arith.constant dense<0.000000e+00> : vector<16x16xf32>
    %104 = tpu.matmul %103, %101, %cst_103 {dimension_numbers = #tpu.dot_dimension_numbers<[1], [0], [0], [1], [0, 0, 1, 1], [], []>} : vector<16x16xf32>, vector<16x16xf32>, vector<16x16xf32> -> vector<16x16xf32>
    %105 = arith.addf %98, %104 : vector<16x16xf32>
    %c2_104 = arith.constant 2 : index
    %c0_105 = arith.constant 0 : index
    %c0_106 = arith.constant 0 : index
    %106 = vector.load %arg2[%c2_104, %c0_105, %c0_106] : memref<7x32x16xf32, #tpu.memory_space<vmem>>, vector<1x32x16xf32>
    %107 = vector.shape_cast %106 : vector<1x32x16xf32> to vector<32x16xf32>
    %cst_107 = arith.constant dense<0.000000e+00> : vector<16x16xf32>
    %108 = tpu.matmul %92, %107, %cst_107 {dimension_numbers = #tpu.dot_dimension_numbers<[1], [0], [0], [1], [0, 0, 1, 1], [], []>} : vector<16x32xf32>, vector<32x16xf32>, vector<16x16xf32> -> vector<16x16xf32>
    %c2_108 = arith.constant 2 : index
    %c0_109 = arith.constant 0 : index
    %c0_110 = arith.constant 0 : index
    %109 = vector.load %arg3[%c2_108, %c0_109, %c0_110] : memref<7x16x16xf32, #tpu.memory_space<vmem>>, vector<1x16x16xf32>
    %110 = vector.shape_cast %109 : vector<1x16x16xf32> to vector<16x16xf32>
    %cst_111 = arith.constant dense<0.000000e+00> : vector<16x16xf32>
    %111 = tpu.matmul %110, %108, %cst_111 {dimension_numbers = #tpu.dot_dimension_numbers<[1], [0], [0], [1], [0, 0, 1, 1], [], []>} : vector<16x16xf32>, vector<16x16xf32>, vector<16x16xf32> -> vector<16x16xf32>
    %112 = arith.addf %105, %111 : vector<16x16xf32>
    %c3_112 = arith.constant 3 : index
    %c0_113 = arith.constant 0 : index
    %c0_114 = arith.constant 0 : index
    %113 = vector.load %arg2[%c3_112, %c0_113, %c0_114] : memref<7x32x16xf32, #tpu.memory_space<vmem>>, vector<1x32x16xf32>
    %114 = vector.shape_cast %113 : vector<1x32x16xf32> to vector<32x16xf32>
    %cst_115 = arith.constant dense<0.000000e+00> : vector<16x16xf32>
    %115 = tpu.matmul %92, %114, %cst_115 {dimension_numbers = #tpu.dot_dimension_numbers<[1], [0], [0], [1], [0, 0, 1, 1], [], []>} : vector<16x32xf32>, vector<32x16xf32>, vector<16x16xf32> -> vector<16x16xf32>
    %c3_116 = arith.constant 3 : index
    %c0_117 = arith.constant 0 : index
    %c0_118 = arith.constant 0 : index
    %116 = vector.load %arg3[%c3_116, %c0_117, %c0_118] : memref<7x16x16xf32, #tpu.memory_space<vmem>>, vector<1x16x16xf32>
    %117 = vector.shape_cast %116 : vector<1x16x16xf32> to vector<16x16xf32>
    %cst_119 = arith.constant dense<0.000000e+00> : vector<16x16xf32>
    %118 = tpu.matmul %117, %115, %cst_119 {dimension_numbers = #tpu.dot_dimension_numbers<[1], [0], [0], [1], [0, 0, 1, 1], [], []>} : vector<16x16xf32>, vector<16x16xf32>, vector<16x16xf32> -> vector<16x16xf32>
    %119 = arith.addf %112, %118 : vector<16x16xf32>
    %c4_120 = arith.constant 4 : index
    %c0_121 = arith.constant 0 : index
    %c0_122 = arith.constant 0 : index
    %120 = vector.load %arg2[%c4_120, %c0_121, %c0_122] : memref<7x32x16xf32, #tpu.memory_space<vmem>>, vector<1x32x16xf32>
    %121 = vector.shape_cast %120 : vector<1x32x16xf32> to vector<32x16xf32>
    %cst_123 = arith.constant dense<0.000000e+00> : vector<16x16xf32>
    %122 = tpu.matmul %92, %121, %cst_123 {dimension_numbers = #tpu.dot_dimension_numbers<[1], [0], [0], [1], [0, 0, 1, 1], [], []>} : vector<16x32xf32>, vector<32x16xf32>, vector<16x16xf32> -> vector<16x16xf32>
    %c4_124 = arith.constant 4 : index
    %c0_125 = arith.constant 0 : index
    %c0_126 = arith.constant 0 : index
    %123 = vector.load %arg3[%c4_124, %c0_125, %c0_126] : memref<7x16x16xf32, #tpu.memory_space<vmem>>, vector<1x16x16xf32>
    %124 = vector.shape_cast %123 : vector<1x16x16xf32> to vector<16x16xf32>
    %cst_127 = arith.constant dense<0.000000e+00> : vector<16x16xf32>
    %125 = tpu.matmul %124, %122, %cst_127 {dimension_numbers = #tpu.dot_dimension_numbers<[1], [0], [0], [1], [0, 0, 1, 1], [], []>} : vector<16x16xf32>, vector<16x16xf32>, vector<16x16xf32> -> vector<16x16xf32>
    %126 = arith.addf %119, %125 : vector<16x16xf32>
    %c5_128 = arith.constant 5 : index
    %c0_129 = arith.constant 0 : index
    %c0_130 = arith.constant 0 : index
    %127 = vector.load %arg2[%c5_128, %c0_129, %c0_130] : memref<7x32x16xf32, #tpu.memory_space<vmem>>, vector<1x32x16xf32>
    %128 = vector.shape_cast %127 : vector<1x32x16xf32> to vector<32x16xf32>
    %cst_131 = arith.constant dense<0.000000e+00> : vector<16x16xf32>
    %129 = tpu.matmul %92, %128, %cst_131 {dimension_numbers = #tpu.dot_dimension_numbers<[1], [0], [0], [1], [0, 0, 1, 1], [], []>} : vector<16x32xf32>, vector<32x16xf32>, vector<16x16xf32> -> vector<16x16xf32>
    %c5_132 = arith.constant 5 : index
    %c0_133 = arith.constant 0 : index
    %c0_134 = arith.constant 0 : index
    %130 = vector.load %arg3[%c5_132, %c0_133, %c0_134] : memref<7x16x16xf32, #tpu.memory_space<vmem>>, vector<1x16x16xf32>
    %131 = vector.shape_cast %130 : vector<1x16x16xf32> to vector<16x16xf32>
    %cst_135 = arith.constant dense<0.000000e+00> : vector<16x16xf32>
    %132 = tpu.matmul %131, %129, %cst_135 {dimension_numbers = #tpu.dot_dimension_numbers<[1], [0], [0], [1], [0, 0, 1, 1], [], []>} : vector<16x16xf32>, vector<16x16xf32>, vector<16x16xf32> -> vector<16x16xf32>
    %133 = arith.addf %126, %132 : vector<16x16xf32>
    %c6_136 = arith.constant 6 : index
    %c0_137 = arith.constant 0 : index
    %c0_138 = arith.constant 0 : index
    %134 = vector.load %arg2[%c6_136, %c0_137, %c0_138] : memref<7x32x16xf32, #tpu.memory_space<vmem>>, vector<1x32x16xf32>
    %135 = vector.shape_cast %134 : vector<1x32x16xf32> to vector<32x16xf32>
    %cst_139 = arith.constant dense<0.000000e+00> : vector<16x16xf32>
    %136 = tpu.matmul %92, %135, %cst_139 {dimension_numbers = #tpu.dot_dimension_numbers<[1], [0], [0], [1], [0, 0, 1, 1], [], []>} : vector<16x32xf32>, vector<32x16xf32>, vector<16x16xf32> -> vector<16x16xf32>
    %c6_140 = arith.constant 6 : index
    %c0_141 = arith.constant 0 : index
    %c0_142 = arith.constant 0 : index
    %137 = vector.load %arg3[%c6_140, %c0_141, %c0_142] : memref<7x16x16xf32, #tpu.memory_space<vmem>>, vector<1x16x16xf32>
    %138 = vector.shape_cast %137 : vector<1x16x16xf32> to vector<16x16xf32>
    %cst_143 = arith.constant dense<0.000000e+00> : vector<16x16xf32>
    %139 = tpu.matmul %138, %136, %cst_143 {dimension_numbers = #tpu.dot_dimension_numbers<[1], [0], [0], [1], [0, 0, 1, 1], [], []>} : vector<16x16xf32>, vector<16x16xf32>, vector<16x16xf32> -> vector<16x16xf32>
    %140 = arith.addf %133, %139 : vector<16x16xf32>
    %141 = vector.broadcast %0 : f32 to vector<16x16xf32>
    %142 = arith.addf %140, %141 : vector<16x16xf32>
    %143 = arith.negf %142 : vector<16x16xf32>
    %144 = math.exp %143 : vector<16x16xf32>
    %cst_144 = arith.constant 1.000000e+00 : f32
    %145 = vector.broadcast %cst_144 : f32 to vector<16x16xf32>
    %146 = arith.addf %145, %144 : vector<16x16xf32>
    %147 = arith.divf %145, %146 : vector<16x16xf32>
    %c1_145 = arith.constant 1 : index
    %c0_146 = arith.constant 0 : index
    %c0_147 = arith.constant 0 : index
    %c0_148 = arith.constant 0 : index
    %148 = vector.load %arg5[%c1_145, %c0_146, %c0_147, %c0_148] : memref<2x1x16x16xf32, #tpu.memory_space<vmem>>, vector<1x1x16x16xf32>
    %149 = vector.shape_cast %148 : vector<1x1x16x16xf32> to vector<16x16xf32>
    %150 = vector.shape_cast %147 : vector<16x16xf32> to vector<1x1x16x16xf32>
    tpu.vector_store %arg5[%c1_145, %c0_146, %c0_147, %c0_148], %150 {strides = array<i32>} : memref<2x1x16x16xf32, #tpu.memory_space<vmem>>, vector<1x1x16x16xf32>,
    return
  }
  func.func @transform_0(%arg0: i32) -> i32 {
    %c0_i32 = arith.constant 0 : i32
    %c0_i32_0 = arith.constant 0 : i32
    return %c0_i32 : i32
  }
  func.func @transform_1(%arg0: i32) -> (i32, i32, i32) {
    %c0_i32 = arith.constant 0 : i32
    %c0_i32_0 = arith.constant 0 : i32
    %c0_i32_1 = arith.constant 0 : i32
    %c0_i32_2 = arith.constant 0 : i32
    return %c0_i32, %c0_i32_0, %c0_i32_1 : i32, i32, i32
  }
  func.func @transform_2(%arg0: i32) -> (i32, i32, i32) {
    %c0_i32 = arith.constant 0 : i32
    %c0_i32_0 = arith.constant 0 : i32
    %c0_i32_1 = arith.constant 0 : i32
    %c0_i32_2 = arith.constant 0 : i32
    return %c0_i32, %c0_i32_0, %c0_i32_1 : i32, i32, i32
  }
  func.func @transform_3(%arg0: i32) -> (i32, i32, i32, i32) {
    %c0_i32 = arith.constant 0 : i32
    %c0_i32_0 = arith.constant 0 : i32
    %c0_i32_1 = arith.constant 0 : i32
    %c0_i32_2 = arith.constant 0 : i32
    return %arg0, %c0_i32, %c0_i32_0, %c0_i32_1 : i32, i32, i32, i32
  }
  func.func @transform_4(%arg0: i32) -> (i32, i32, i32, i32) {
    %c0_i32 = arith.constant 0 : i32
    %c0_i32_0 = arith.constant 0 : i32
    %c0_i32_1 = arith.constant 0 : i32
    %c0_i32_2 = arith.constant 0 : i32
    return %arg0, %c0_i32, %c0_i32_0, %c0_i32_1 : i32, i32, i32, i32
  }
}

</mosaic_0001>

<llo_original>
// kernel: tpu_custom_call.1
$region0: #{tpu_custom_call.1}
  #allocation0 [shape = 'u32[]', space=smem, size = 0x4, offset = 0x4, fixed_abs, tag = 'smem constant byte address 0x4 - core index']
  #allocation1 [shape = 'u32[144,128]{1,0:T(1,128)}', space=vmem, size = 0x12000, scoped, tag = 'internal scratch']
  #allocation2 [shape = 'f32[1]{0:T(128)S(6)}', space=smem, size = 0x200, scoped, tag = 'scoped memory for tpu_custom_call.1']
  %s0 = inlined_call_operand.<no memory space> [shape: f32[1], index: 0, kind: input, shape index: {}]
  %s1 = inlined_call_operand.vmem [shape: f32[7,32,16], index: 1, kind: input, shape index: {}]
  %s2 = inlined_call_operand.vmem [shape: f32[7,16,16], index: 2, kind: input, shape index: {}]
  %s3 = inlined_call_operand.vmem [shape: f32[2,4,16,16], index: 3, kind: input, shape index: {}]
  %s4 = inlined_call_operand.hbm [shape: f32[2,1,16,16], index: 4, kind: output, shape index: {}]
  %s5 = sld [smem:[#allocation0]]
  $region26: #{tpu_custom_call.1} parent=0
    _
  %s7 = ssub.s32 1, %s5
  %s8 = scalar_select 0, %s7, %s5
  %9 = sst [smem:[#allocation2]] %s0
  $region1: #{tpu_custom_call.1} parent=0
    #allocation3 [shape = 'u8[16384]{0}', space=vmem, size = 0x4000, scoped, tag = 'output window, operand 0, single buffered']
    #allocation4 [shape = 's32[1]{0}', space=sflag, size = 0x4, scoped, tag = 'scoped memory for tpu_custom_call.1']
    %10 = vsyncpa [#allocation4], 0
    // Predicated region
    $region2: #{tpu_custom_call.1} parent=1 // pred_check
      _
    $region3: #{tpu_custom_call.1} parent=1 // pred_check_branch
      %12 = sbr.rel (0) target = $region5
    $region4: #{tpu_custom_call.1} parent=1 // pred_region
      _
    $region5: #{tpu_custom_call.1} parent=1 // pred_fallthru
      _
    // Predicated region
    $region6: #{tpu_custom_call.1} parent=1 // pred_check
      _
    $region7: #{tpu_custom_call.1} parent=1 // pred_check_branch
      %14 = sbr.rel (0) target = $region9
    $region8: #{tpu_custom_call.1} parent=1 // pred_region
      _
    $region9: #{tpu_custom_call.1} parent=1 // pred_fallthru
      _
    // Predicated region
    $region10: #{tpu_custom_call.1} parent=1 // pred_check
      _
    $region11: #{tpu_custom_call.1} parent=1 // pred_check_branch
      %16 = sbr.rel (0) target = $region13
    $region12: #{tpu_custom_call.1} parent=1 // pred_region
      _
    $region13: #{tpu_custom_call.1} parent=1 // pred_fallthru
      _
    // Predicated region
    $region14: #{tpu_custom_call.1} parent=1 // pred_check
      _
    $region15: #{tpu_custom_call.1} parent=1 // pred_check_branch
      %18 = sbr.rel (0) target = $region17
    $region16: #{tpu_custom_call.1} parent=1 // pred_region
      _
    $region17: #{tpu_custom_call.1} parent=1 // pred_fallthru
      _
    %s19 = sld [smem:[#allocation2]]
    %v20 = vld [vmem:[%s3] sm:$0xff]
    %v21 = vld [vmem:[%s3 + $0x8] sm:$0xff]
    %s22 = scalar_lea.vmem %s3, 16
    %v23 = vld [vmem:[%s22] sm:$0xff]
    %v24 = vld [vmem:[%s22 + $0x8] sm:$0xff]
    %v25 = vadd.f32 %v20, %v23
    %v26 = vadd.f32 %v21, %v24
    %v27 = vmax.f32 %v20, %v23
    %v28 = vmax.f32 %v21, %v24
    %s29 = scalar_lea.vmem %s3, 32
    %v30 = vld [vmem:[%s29] sm:$0xff]
    %v31 = vld [vmem:[%s29 + $0x8] sm:$0xff]
    %v32 = vadd.f32 %v25, %v30
    %v33 = vadd.f32 %v26, %v31
    %v34 = vmax.f32 %v27, %v30
    %v35 = vmax.f32 %v28, %v31
    %s36 = scalar_lea.vmem %s3, 48
    %v37 = vld [vmem:[%s36] sm:$0xff]
    %v38 = vld [vmem:[%s36 + $0x8] sm:$0xff]
    %v39 = vadd.f32 %v32, %v37
    %v40 = vadd.f32 %v33, %v38
    %v41 = vmax.f32 %v34, %v37
    %v42 = vmax.f32 %v35, %v38
    %v43 = vmul.f32 %v39, 0.25
    %v44 = vmul.f32 %v40, 0.25
    %47 = vrot.lane.b32.xlu0 %v41, 16
    %v48 = vpop.permute.xlu0 %47
    %49 = vrot.lane.b32.xlu0 %v42, 16
    %v50 = vpop.permute.xlu0 %49
    %vm53 = vcmask 130048
    %v54 = vsel %vm53, %v43, %v48
    %v55 = vsel %vm53, %v44, %v50
    %v56 = vld [vmem:[%s1] sm:$0xff]
    %v57 = vld [vmem:[%s1 + $0x8] sm:$0xff]
    %v58 = vld [vmem:[%s1 + $0x10] sm:$0xff]
    %v59 = vld [vmem:[%s1 + $0x18] sm:$0xff]
    %vm60 = vcmask 261120
    %v62 = vsel %vm60, %v54, 0
    %v65 = vsel %vm60, %v55, 0
    %67 = vmatprep.subr.mxu0 0.0
    %68 = vmatpush1.msra.mxu0 %v56
    %69 = vmatprep.subr.mxu0 0.0
    %70 = vmatpush1.msra.mxu0 %v57
    %71 = vmatprep.subr.mxu0 0.0
    %72 = vmatpush1.msra.mxu0 %v58
    %73 = vmatprep.subr.mxu0 0.0
    %74 = vmatpush1.msra.mxu0 %v59
    %75 = vmatprep.subr.mxu0 0.0
    %76 = vmatpush1.msra.mxu0 0.0
    %77 = vmatprep.subr.mxu0 0.0
    %78 = vmatpush1.msra.mxu0 0.0
    %79 = vmatprep.subr.mxu0 0.0
    %80 = vmatpush1.msra.mxu0 0.0
    %81 = vmatprep.subr.mxu0 0.0
    %82 = vmatpush1.msra.mxu0 0.0
    %83 = vmatprep.subr.mxu0 0.0
    %84 = vmatpush1.msra.mxu0 0.0
    %85 = vmatprep.subr.mxu0 0.0
    %86 = vmatpush1.msra.mxu0 0.0
    %87 = vmatprep.subr.mxu0 0.0
    %88 = vmatpush1.msra.mxu0 0.0
    %89 = vmatprep.subr.mxu0 0.0
    %90 = vmatpush1.msra.mxu0 0.0
    %91 = vmatprep.subr.mxu0 0.0
    %92 = vmatpush1.msra.mxu0 0.0
    %93 = vmatprep.subr.mxu0 0.0
    %94 = vmatpush1.msra.mxu0 0.0
    %95 = vmatprep.subr.mxu0 0.0
    %96 = vmatpush1.msra.mxu0 0.0
    %97 = vmatprep.subr.mxu0 0.0
    %98 = vmatpush1.msra.mxu0 0.0
    %99 = vmatprep.subr.mxu0 0.0
    %100 = vmatpush1.msra.mxu0 0.0
    %101 = vmatprep.subr.mxu0 0.0
    %102 = vmatpush1.msra.mxu0 0.0
    %103 = vmatprep.subr.mxu0 0.0
    %104 = vmatpush1.msra.mxu0 0.0
    %105 = vmatprep.subr.mxu0 0.0
    %106 = vmatpush1.msra.mxu0 0.0
    %107 = vmatprep.subr.mxu0 0.0
    %108 = vmatpush1.msra.mxu0 0.0
    %109 = vmatprep.subr.mxu0 0.0
    %110 = vmatpush1.msra.mxu0 0.0
    %111 = vmatprep.subr.mxu0 0.0
    %112 = vmatpush1.msra.mxu0 0.0
    %113 = vmatprep.subr.mxu0 0.0
    %114 = vmatpush1.msra.mxu0 0.0
    %115 = vmatprep.subr.mxu0 0.0
    %116 = vmatpush1.msra.mxu0 0.0
    %117 = vmatprep.subr.mxu0 0.0
    %118 = vmatpush1.msra.mxu0 0.0
    %119 = vmatprep.subr.mxu0 0.0
    %120 = vmatpush1.msra.mxu0 0.0
    %121 = vmatprep.subr.mxu0 0.0
    %122 = vmatpush1.msra.mxu0 0.0
    %123 = vmatprep.subr.mxu0 0.0
    %124 = vmatpush1.msra.mxu0 0.0
    %125 = vmatprep.subr.mxu0 0.0
    %126 = vmatpush1.msra.mxu0 0.0
    %127 = vmatprep.subr.mxu0 0.0
    %128 = vmatpush1.msra.mxu0 0.0
    %129 = vmatprep.subr.mxu0 0.0
    %130 = vmatpush1.msra.mxu0 0.0
    %131 = vmatprep.mubr.f32.mxu0 0.0
    %132 = vmatmul.mubr.f32.gmra.mrb[0].mxu0 %v62
    %v133 = vpop.f32.mrb[0].mxu0
    %v134 = vadd.f32 0.0, %v133
    %v135 = vpop.f32.mrb[0].mxu0
    %136 = vmatprep.mubr.f32.mxu0 0.0
    %137 = vmatmul.mubr.f32.gmra.mrb[0].mxu0 %v65
    %v138 = vpop.f32.mrb[0].mxu0
    %v139 = vadd.f32 0.0, %v138
    %v140 = vpop.f32.mrb[0].mxu0
    %141 = vdwg.mxu0
    %v142 = vld [vmem:[%s2] sm:$0xff]
    %v143 = vld [vmem:[%s2 + $0x8] sm:$0xff]
    %s144 = scalar_lea.vmem %s1, 32
    %v145 = vld [vmem:[%s144] sm:$0xff]
    %v146 = vld [vmem:[%s144 + $0x8] sm:$0xff]
    %v147 = vld [vmem:[%s144 + $0x10] sm:$0xff]
    %v148 = vld [vmem:[%s144 + $0x18] sm:$0xff]
    %149 = vmatprep.subr.mxu0 0.0
    %150 = vmatpush1.msra.mxu0 %v145
    %151 = vmatprep.subr.mxu0 0.0
    %152 = vmatpush1.msra.mxu0 %v146
    %153 = vmatprep.subr.mxu0 0.0
    %154 = vmatpush1.msra.mxu0 %v147
    %155 = vmatprep.subr.mxu0 0.0
    %156 = vmatpush1.msra.mxu0 %v148
    %157 = vmatprep.subr.mxu0 0.0
    %158 = vmatpush1.msra.mxu0 0.0
    %159 = vmatprep.subr.mxu0 0.0
    %160 = vmatpush1.msra.mxu0 0.0
    %161 = vmatprep.subr.mxu0 0.0
    %162 = vmatpush1.msra.mxu0 0.0
    %163 = vmatprep.subr.mxu0 0.0
    %164 = vmatpush1.msra.mxu0 0.0
    %165 = vmatprep.subr.mxu0 0.0
    %166 = vmatpush1.msra.mxu0 0.0
    %167 = vmatprep.subr.mxu0 0.0
    %168 = vmatpush1.msra.mxu0 0.0
    %169 = vmatprep.subr.mxu0 0.0
    %170 = vmatpush1.msra.mxu0 0.0
    %171 = vmatprep.subr.mxu0 0.0
    %172 = vmatpush1.msra.mxu0 0.0
    %173 = vmatprep.subr.mxu0 0.0
    %174 = vmatpush1.msra.mxu0 0.0
    %175 = vmatprep.subr.mxu0 0.0
    %176 = vmatpush1.msra.mxu0 0.0
    %177 = vmatprep.subr.mxu0 0.0
    %178 = vmatpush1.msra.mxu0 0.0
    %179 = vmatprep.subr.mxu0 0.0
    %180 = vmatpush1.msra.mxu0 0.0
    %181 = vmatprep.subr.mxu0 0.0
    %182 = vmatpush1.msra.mxu0 0.0
    %183 = vmatprep.subr.mxu0 0.0
    %184 = vmatpush1.msra.mxu0 0.0
    %185 = vmatprep.subr.mxu0 0.0
    %186 = vmatpush1.msra.mxu0 0.0
    %187 = vmatprep.subr.mxu0 0.0
    %188 = vmatpush1.msra.mxu0 0.0
    %189 = vmatprep.subr.mxu0 0.0
    %190 = vmatpush1.msra.mxu0 0.0
    %191 = vmatprep.subr.mxu0 0.0
    %192 = vmatpush1.msra.mxu0 0.0
    %193 = vmatprep.subr.mxu0 0.0
    %194 = vmatpush1.msra.mxu0 0.0
    %195 = vmatprep.subr.mxu0 0.0
    %196 = vmatpush1.msra.mxu0 0.0
    %197 = vmatprep.subr.mxu0 0.0
    %198 = vmatpush1.msra.mxu0 0.0
    %199 = vmatprep.subr.mxu0 0.0
    %200 = vmatpush1.msra.mxu0 0.0
    %201 = vmatprep.subr.mxu0 0.0
    %202 = vmatpush1.msra.mxu0 0.0
    %203 = vmatprep.subr.mxu0 0.0
    %204 = vmatpush1.msra.mxu0 0.0
    %205 = vmatprep.subr.mxu0 0.0
    %206 = vmatpush1.msra.mxu0 0.0
    %207 = vmatprep.subr.mxu0 0.0
    %208 = vmatpush1.msra.mxu0 0.0
    %209 = vmatprep.subr.mxu0 0.0
    %210 = vmatpush1.msra.mxu0 0.0
    %211 = vmatprep.subr.mxu0 0.0
    %212 = vmatpush1.msra.mxu0 0.0
    %213 = vmatprep.mubr.f32.mxu0 0.0
    %214 = vmatmul.mubr.f32.gmra.mrb[0].mxu0 %v62
    %v215 = vpop.f32.mrb[0].mxu0
    %v216 = vadd.f32 0.0, %v215
    %v217 = vpop.f32.mrb[0].mxu0
    %218 = vmatprep.mubr.f32.mxu0 0.0
    %219 = vmatmul.mubr.f32.gmra.mrb[0].mxu0 %v65
    %v220 = vpop.f32.mrb[0].mxu0
    %v221 = vadd.f32 0.0, %v220
    %v222 = vpop.f32.mrb[0].mxu0
    %223 = vdwg.mxu0
    %s224 = scalar_lea.vmem %s2, 16
    %v225 = vld [vmem:[%s224] sm:$0xff]
    %v226 = vld [vmem:[%s224 + $0x8] sm:$0xff]
    %v228 = vsel %vm53, %v225, 0
    %v231 = vsel %vm53, %v226, 0
    %233 = vmatprep.subr.mxu0 0.0
    %234 = vmatpush1.msra.mxu0 %v216
    %235 = vmatprep.subr.mxu0 0.0
    %236 = vmatpush1.msra.mxu0 %v221
    %237 = vmatprep.subr.mxu0 0.0
    %238 = vmatpush1.msra.mxu0 0.0
    %239 = vmatprep.subr.mxu0 0.0
    %240 = vmatpush1.msra.mxu0 0.0
    %241 = vmatprep.subr.mxu0 0.0
    %242 = vmatpush1.msra.mxu0 0.0
    %243 = vmatprep.subr.mxu0 0.0
    %244 = vmatpush1.msra.mxu0 0.0
    %245 = vmatprep.subr.mxu0 0.0
    %246 = vmatpush1.msra.mxu0 0.0
    %247 = vmatprep.subr.mxu0 0.0
    %248 = vmatpush1.msra.mxu0 0.0
    %249 = vmatprep.subr.mxu0 0.0
    %250 = vmatpush1.msra.mxu0 0.0
    %251 = vmatprep.subr.mxu0 0.0
    %252 = vmatpush1.msra.mxu0 0.0
    %253 = vmatprep.subr.mxu0 0.0
    %254 = vmatpush1.msra.mxu0 0.0
    %255 = vmatprep.subr.mxu0 0.0
    %256 = vmatpush1.msra.mxu0 0.0
    %257 = vmatprep.subr.mxu0 0.0
    %258 = vmatpush1.msra.mxu0 0.0
    %259 = vmatprep.subr.mxu0 0.0
    %260 = vmatpush1.msra.mxu0 0.0
    %261 = vmatprep.subr.mxu0 0.0
    %262 = vmatpush1.msra.mxu0 0.0
    %263 = vmatprep.subr.mxu0 0.0
    %264 = vmatpush1.msra.mxu0 0.0
    %265 = vmatprep.subr.mxu0 0.0
    %266 = vmatpush1.msra.mxu0 0.0
    %267 = vmatprep.subr.mxu0 0.0
    %268 = vmatpush1.msra.mxu0 0.0
    %269 = vmatprep.subr.mxu0 0.0
    %270 = vmatpush1.msra.mxu0 0.0
    %271 = vmatprep.subr.mxu0 0.0
    %272 = vmatpush1.msra.mxu0 0.0
    %273 = vmatprep.subr.mxu0 0.0
    %274 = vmatpush1.msra.mxu0 0.0
    %275 = vmatprep.subr.mxu0 0.0
    %276 = vmatpush1.msra.mxu0 0.0
    %277 = vmatprep.subr.mxu0 0.0
    %278 = vmatpush1.msra.mxu0 0.0
    %279 = vmatprep.subr.mxu0 0.0
    %280 = vmatpush1.msra.mxu0 0.0
    %281 = vmatprep.subr.mxu0 0.0
    %282 = vmatpush1.msra.mxu0 0.0
    %283 = vmatprep.subr.mxu0 0.0
    %284 = vmatpush1.msra.mxu0 0.0
    %285 = vmatprep.subr.mxu0 0.0
    %286 = vmatpush1.msra.mxu0 0.0
    %287 = vmatprep.subr.mxu0 0.0
    %288 = vmatpush1.msra.mxu0 0.0
    %289 = vmatprep.subr.mxu0 0.0
    %290 = vmatpush1.msra.mxu0 0.0
    %291 = vmatprep.subr.mxu0 0.0
    %292 = vmatpush1.msra.mxu0 0.0
    %293 = vmatprep.subr.mxu0 0.0
    %294 = vmatpush1.msra.mxu0 0.0
    %295 = vmatprep.subr.mxu0 0.0
    %296 = vmatpush1.msra.mxu0 0.0
    %297 = vmatprep.mubr.f32.mxu0 0.0
    %298 = vmatmul.mubr.f32.gmra.mrb[0].mxu0 %v228
    %v299 = vpop.f32.mrb[0].mxu0
    %v300 = vadd.f32 0.0, %v299
    %v301 = vpop.f32.mrb[0].mxu0
    %302 = vmatprep.mubr.f32.mxu0 0.0
    %303 = vmatmul.mubr.f32.gmra.mrb[0].mxu0 %v231
    %v304 = vpop.f32.mrb[0].mxu0
    %v305 = vadd.f32 0.0, %v304
    %v306 = vpop.f32.mrb[0].mxu0
    %307 = vdwg.mxu0
    %v309 = vsel %vm53, %v142, 0
    %v312 = vsel %vm53, %v143, 0
    %314 = vmatprep.subr.mxu0 0.0
    %315 = vmatpush1.msra.mxu0 %v134
    %316 = vmatprep.subr.mxu0 0.0
    %317 = vmatpush1.msra.mxu0 %v139
    %318 = vmatprep.subr.mxu0 0.0
    %319 = vmatpush1.msra.mxu0 0.0
    %320 = vmatprep.subr.mxu0 0.0
    %321 = vmatpush1.msra.mxu0 0.0
    %322 = vmatprep.subr.mxu0 0.0
    %323 = vmatpush1.msra.mxu0 0.0
    %324 = vmatprep.subr.mxu0 0.0
    %325 = vmatpush1.msra.mxu0 0.0
    %326 = vmatprep.subr.mxu0 0.0
    %327 = vmatpush1.msra.mxu0 0.0
    %328 = vmatprep.subr.mxu0 0.0
    %329 = vmatpush1.msra.mxu0 0.0
    %330 = vmatprep.subr.mxu0 0.0
    %331 = vmatpush1.msra.mxu0 0.0
    %332 = vmatprep.subr.mxu0 0.0
    %333 = vmatpush1.msra.mxu0 0.0
    %334 = vmatprep.subr.mxu0 0.0
    %335 = vmatpush1.msra.mxu0 0.0
    %336 = vmatprep.subr.mxu0 0.0
    %337 = vmatpush1.msra.mxu0 0.0
    %338 = vmatprep.subr.mxu0 0.0
    %339 = vmatpush1.msra.mxu0 0.0
    %340 = vmatprep.subr.mxu0 0.0
    %341 = vmatpush1.msra.mxu0 0.0
    %342 = vmatprep.subr.mxu0 0.0
    %343 = vmatpush1.msra.mxu0 0.0
    %344 = vmatprep.subr.mxu0 0.0
    %345 = vmatpush1.msra.mxu0 0.0
    %346 = vmatprep.subr.mxu0 0.0
    %347 = vmatpush1.msra.mxu0 0.0
    %348 = vmatprep.subr.mxu0 0.0
    %349 = vmatpush1.msra.mxu0 0.0
    %350 = vmatprep.subr.mxu0 0.0
    %351 = vmatpush1.msra.mxu0 0.0
    %352 = vmatprep.subr.mxu0 0.0
    %353 = vmatpush1.msra.mxu0 0.0
    %354 = vmatprep.subr.mxu0 0.0
    %355 = vmatpush1.msra.mxu0 0.0
    %356 = vmatprep.subr.mxu0 0.0
    %357 = vmatpush1.msra.mxu0 0.0
    %358 = vmatprep.subr.mxu0 0.0
    %359 = vmatpush1.msra.mxu0 0.0
    %360 = vmatprep.subr.mxu0 0.0
    %361 = vmatpush1.msra.mxu0 0.0
    %362 = vmatprep.subr.mxu0 0.0
    %363 = vmatpush1.msra.mxu0 0.0
    %364 = vmatprep.subr.mxu0 0.0
    %365 = vmatpush1.msra.mxu0 0.0
    %366 = vmatprep.subr.mxu0 0.0
    %367 = vmatpush1.msra.mxu0 0.0
    %368 = vmatprep.subr.mxu0 0.0
    %369 = vmatpush1.msra.mxu0 0.0
    %370 = vmatprep.subr.mxu0 0.0
    %371 = vmatpush1.msra.mxu0 0.0
    %372 = vmatprep.subr.mxu0 0.0
    %373 = vmatpush1.msra.mxu0 0.0
    %374 = vmatprep.subr.mxu0 0.0
    %375 = vmatpush1.msra.mxu0 0.0
    %376 = vmatprep.subr.mxu0 0.0
    %377 = vmatpush1.msra.mxu0 0.0
    %378 = vmatprep.mubr.f32.mxu0 0.0
    %379 = vmatmul.mubr.f32.gmra.mrb[0].mxu0 %v309
    %v380 = vpop.f32.mrb[0].mxu0
    %v381 = vadd.f32 %v300, %v380
    %v382 = vpop.f32.mrb[0].mxu0
    %383 = vmatprep.mubr.f32.mxu0 0.0
    %384 = vmatmul.mubr.f32.gmra.mrb[0].mxu0 %v312
    %v385 = vpop.f32.mrb[0].mxu0
    %v386 = vadd.f32 %v305, %v385
    %v387 = vpop.f32.mrb[0].mxu0
    %388 = vdwg.mxu0
    %s389 = scalar_lea.vmem %s1, 64
    %v390 = vld [vmem:[%s389] sm:$0xff]
    %v391 = vld [vmem:[%s389 + $0x8] sm:$0xff]
    %v392 = vld [vmem:[%s389 + $0x10] sm:$0xff]
    %v393 = vld [vmem:[%s389 + $0x18] sm:$0xff]
    %394 = vmatprep.subr.mxu0 0.0
    %395 = vmatpush1.msra.mxu0 %v390
    %396 = vmatprep.subr.mxu0 0.0
    %397 = vmatpush1.msra.mxu0 %v391
    %398 = vmatprep.subr.mxu0 0.0
    %399 = vmatpush1.msra.mxu0 %v392
    %400 = vmatprep.subr.mxu0 0.0
    %401 = vmatpush1.msra.mxu0 %v393
    %402 = vmatprep.subr.mxu0 0.0
    %403 = vmatpush1.msra.mxu0 0.0
    %404 = vmatprep.subr.mxu0 0.0
    %405 = vmatpush1.msra.mxu0 0.0
    %406 = vmatprep.subr.mxu0 0.0
    %407 = vmatpush1.msra.mxu0 0.0
    %408 = vmatprep.subr.mxu0 0.0
    %409 = vmatpush1.msra.mxu0 0.0
    %410 = vmatprep.subr.mxu0 0.0
    %411 = vmatpush1.msra.mxu0 0.0
    %412 = vmatprep.subr.mxu0 0.0
    %413 = vmatpush1.msra.mxu0 0.0
    %414 = vmatprep.subr.mxu0 0.0
    %415 = vmatpush1.msra.mxu0 0.0
    %416 = vmatprep.subr.mxu0 0.0
    %417 = vmatpush1.msra.mxu0 0.0
    %418 = vmatprep.subr.mxu0 0.0
    %419 = vmatpush1.msra.mxu0 0.0
    %420 = vmatprep.subr.mxu0 0.0
    %421 = vmatpush1.msra.mxu0 0.0
    %422 = vmatprep.subr.mxu0 0.0
    %423 = vmatpush1.msra.mxu0 0.0
    %424 = vmatprep.subr.mxu0 0.0
    %425 = vmatpush1.msra.mxu0 0.0
    %426 = vmatprep.subr.mxu0 0.0
    %427 = vmatpush1.msra.mxu0 0.0
    %428 = vmatprep.subr.mxu0 0.0
    %429 = vmatpush1.msra.mxu0 0.0
    %430 = vmatprep.subr.mxu0 0.0
    %431 = vmatpush1.msra.mxu0 0.0
    %432 = vmatprep.subr.mxu0 0.0
    %433 = vmatpush1.msra.mxu0 0.0
    %434 = vmatprep.subr.mxu0 0.0
    %435 = vmatpush1.msra.mxu0 0.0
    %436 = vmatprep.subr.mxu0 0.0
    %437 = vmatpush1.msra.mxu0 0.0
    %438 = vmatprep.subr.mxu0 0.0
    %439 = vmatpush1.msra.mxu0 0.0
    %440 = vmatprep.subr.mxu0 0.0
    %441 = vmatpush1.msra.mxu0 0.0
    %442 = vmatprep.subr.mxu0 0.0
    %443 = vmatpush1.msra.mxu0 0.0
    %444 = vmatprep.subr.mxu0 0.0
    %445 = vmatpush1.msra.mxu0 0.0
    %446 = vmatprep.subr.mxu0 0.0
    %447 = vmatpush1.msra.mxu0 0.0
    %448 = vmatprep.subr.mxu0 0.0
    %449 = vmatpush1.msra.mxu0 0.0
    %450 = vmatprep.subr.mxu0 0.0
    %451 = vmatpush1.msra.mxu0 0.0
    %452 = vmatprep.subr.mxu0 0.0
    %453 = vmatpush1.msra.mxu0 0.0
    %454 = vmatprep.subr.mxu0 0.0
    %455 = vmatpush1.msra.mxu0 0.0
    %456 = vmatprep.subr.mxu0 0.0
    %457 = vmatpush1.msra.mxu0 0.0
    %458 = vmatprep.mubr.f32.mxu0 0.0
    %459 = vmatmul.mubr.f32.gmra.mrb[0].mxu0 %v62
    %v460 = vpop.f32.mrb[0].mxu0
    %v461 = vadd.f32 0.0, %v460
    %v462 = vpop.f32.mrb[0].mxu0
    %463 = vmatprep.mubr.f32.mxu0 0.0
    %464 = vmatmul.mubr.f32.gmra.mrb[0].mxu0 %v65
    %v465 = vpop.f32.mrb[0].mxu0
    %v466 = vadd.f32 0.0, %v465
    %v467 = vpop.f32.mrb[0].mxu0
    %468 = vdwg.mxu0
    %s469 = scalar_lea.vmem %s2, 32
    %v470 = vld [vmem:[%s469] sm:$0xff]
    %v471 = vld [vmem:[%s469 + $0x8] sm:$0xff]
    %v473 = vsel %vm53, %v470, 0
    %v476 = vsel %vm53, %v471, 0
    %478 = vmatprep.subr.mxu0 0.0
    %479 = vmatpush1.msra.mxu0 %v461
    %480 = vmatprep.subr.mxu0 0.0
    %481 = vmatpush1.msra.mxu0 %v466
    %482 = vmatprep.subr.mxu0 0.0
    %483 = vmatpush1.msra.mxu0 0.0
    %484 = vmatprep.subr.mxu0 0.0
    %485 = vmatpush1.msra.mxu0 0.0
    %486 = vmatprep.subr.mxu0 0.0
    %487 = vmatpush1.msra.mxu0 0.0
    %488 = vmatprep.subr.mxu0 0.0
    %489 = vmatpush1.msra.mxu0 0.0
    %490 = vmatprep.subr.mxu0 0.0
    %491 = vmatpush1.msra.mxu0 0.0
    %492 = vmatprep.subr.mxu0 0.0
    %493 = vmatpush1.msra.mxu0 0.0
    %494 = vmatprep.subr.mxu0 0.0
    %495 = vmatpush1.msra.mxu0 0.0
    %496 = vmatprep.subr.mxu0 0.0
    %497 = vmatpush1.msra.mxu0 0.0
    %498 = vmatprep.subr.mxu0 0.0
    %499 = vmatpush1.msra.mxu0 0.0
    %500 = vmatprep.subr.mxu0 0.0
    %501 = vmatpush1.msra.mxu0 0.0
    %502 = vmatprep.subr.mxu0 0.0
    %503 = vmatpush1.msra.mxu0 0.0
    %504 = vmatprep.subr.mxu0 0.0
    %505 = vmatpush1.msra.mxu0 0.0
    %506 = vmatprep.subr.mxu0 0.0
    %507 = vmatpush1.msra.mxu0 0.0
    %508 = vmatprep.subr.mxu0 0.0
    %509 = vmatpush1.msra.mxu0 0.0
    %510 = vmatprep.subr.mxu0 0.0
    %511 = vmatpush1.msra.mxu0 0.0
    %512 = vmatprep.subr.mxu0 0.0
    %513 = vmatpush1.msra.mxu0 0.0
    %514 = vmatprep.subr.mxu0 0.0
    %515 = vmatpush1.msra.mxu0 0.0
    %516 = vmatprep.subr.mxu0 0.0
    %517 = vmatpush1.msra.mxu0 0.0
    %518 = vmatprep.subr.mxu0 0.0
    %519 = vmatpush1.msra.mxu0 0.0
    %520 = vmatprep.subr.mxu0 0.0
    %521 = vmatpush1.msra.mxu0 0.0
    %522 = vmatprep.subr.mxu0 0.0
    %523 = vmatpush1.msra.mxu0 0.0
    %524 = vmatprep.subr.mxu0 0.0
    %525 = vmatpush1.msra.mxu0 0.0
    %526 = vmatprep.subr.mxu0 0.0
    %527 = vmatpush1.msra.mxu0 0.0
    %528 = vmatprep.subr.mxu0 0.0
    %529 = vmatpush1.msra.mxu0 0.0
    %530 = vmatprep.subr.mxu0 0.0
    %531 = vmatpush1.msra.mxu0 0.0
    %532 = vmatprep.subr.mxu0 0.0
    %533 = vmatpush1.msra.mxu0 0.0
    %534 = vmatprep.subr.mxu0 0.0
    %535 = vmatpush1.msra.mxu0 0.0
    %536 = vmatprep.subr.mxu0 0.0
    %537 = vmatpush1.msra.mxu0 0.0
    %538 = vmatprep.subr.mxu0 0.0
    %539 = vmatpush1.msra.mxu0 0.0
    %540 = vmatprep.subr.mxu0 0.0
    %541 = vmatpush1.msra.mxu0 0.0
    %542 = vmatprep.mubr.f32.mxu0 0.0
    %543 = vmatmul.mubr.f32.gmra.mrb[0].mxu0 %v473
    %v544 = vpop.f32.mrb[0].mxu0
    %v545 = vadd.f32 0.0, %v544
    %v546 = vpop.f32.mrb[0].mxu0
    %547 = vmatprep.mubr.f32.mxu0 0.0
    %548 = vmatmul.mubr.f32.gmra.mrb[0].mxu0 %v476
    %v549 = vpop.f32.mrb[0].mxu0
    %v550 = vadd.f32 0.0, %v549
    %v551 = vpop.f32.mrb[0].mxu0
    %552 = vdwg.mxu0
    %v553 = vadd.f32 %v381, %v545
    %v554 = vadd.f32 %v386, %v550
    %s555 = scalar_lea.vmem %s1, 96
    %v556 = vld [vmem:[%s555] sm:$0xff]
    %v557 = vld [vmem:[%s555 + $0x8] sm:$0xff]
    %v558 = vld [vmem:[%s555 + $0x10] sm:$0xff]
    %v559 = vld [vmem:[%s555 + $0x18] sm:$0xff]
    %560 = vmatprep.subr.mxu0 0.0
    %561 = vmatpush1.msra.mxu0 %v556
    %562 = vmatprep.subr.mxu0 0.0
    %563 = vmatpush1.msra.mxu0 %v557
    %564 = vmatprep.subr.mxu0 0.0
    %565 = vmatpush1.msra.mxu0 %v558
    %566 = vmatprep.subr.mxu0 0.0
    %567 = vmatpush1.msra.mxu0 %v559
    %568 = vmatprep.subr.mxu0 0.0
    %569 = vmatpush1.msra.mxu0 0.0
    %570 = vmatprep.subr.mxu0 0.0
    %571 = vmatpush1.msra.mxu0 0.0
    %572 = vmatprep.subr.mxu0 0.0
    %573 = vmatpush1.msra.mxu0 0.0
    %574 = vmatprep.subr.mxu0 0.0
    %575 = vmatpush1.msra.mxu0 0.0
    %576 = vmatprep.subr.mxu0 0.0
    %577 = vmatpush1.msra.mxu0 0.0
    %578 = vmatprep.subr.mxu0 0.0
    %579 = vmatpush1.msra.mxu0 0.0
    %580 = vmatprep.subr.mxu0 0.0
    %581 = vmatpush1.msra.mxu0 0.0
    %582 = vmatprep.subr.mxu0 0.0
    %583 = vmatpush1.msra.mxu0 0.0
    %584 = vmatprep.subr.mxu0 0.0
    %585 = vmatpush1.msra.mxu0 0.0
    %586 = vmatprep.subr.mxu0 0.0
    %587 = vmatpush1.msra.mxu0 0.0
    %588 = vmatprep.subr.mxu0 0.0
    %589 = vmatpush1.msra.mxu0 0.0
    %590 = vmatprep.subr.mxu0 0.0
    %591 = vmatpush1.msra.mxu0 0.0
    %592 = vmatprep.subr.mxu0 0.0
    %593 = vmatpush1.msra.mxu0 0.0
    %594 = vmatprep.subr.mxu0 0.0
    %595 = vmatpush1.msra.mxu0 0.0
    %596 = vmatprep.subr.mxu0 0.0
    %597 = vmatpush1.msra.mxu0 0.0
    %598 = vmatprep.subr.mxu0 0.0
    %599 = vmatpush1.msra.mxu0 0.0
    %600 = vmatprep.subr.mxu0 0.0
    %601 = vmatpush1.msra.mxu0 0.0
    %602 = vmatprep.subr.mxu0 0.0
    %603 = vmatpush1.msra.mxu0 0.0
    %604 = vmatprep.subr.mxu0 0.0
    %605 = vmatpush1.msra.mxu0 0.0
    %606 = vmatprep.subr.mxu0 0.0
    %607 = vmatpush1.msra.mxu0 0.0
    %608 = vmatprep.subr.mxu0 0.0
    %609 = vmatpush1.msra.mxu0 0.0
    %610 = vmatprep.subr.mxu0 0.0
    %611 = vmatpush1.msra.mxu0 0.0
    %612 = vmatprep.subr.mxu0 0.0
    %613 = vmatpush1.msra.mxu0 0.0
    %614 = vmatprep.subr.mxu0 0.0
    %615 = vmatpush1.msra.mxu0 0.0
    %616 = vmatprep.subr.mxu0 0.0
    %617 = vmatpush1.msra.mxu0 0.0
    %618 = vmatprep.subr.mxu0 0.0
    %619 = vmatpush1.msra.mxu0 0.0
    %620 = vmatprep.subr.mxu0 0.0
    %621 = vmatpush1.msra.mxu0 0.0
    %622 = vmatprep.subr.mxu0 0.0
    %623 = vmatpush1.msra.mxu0 0.0
    %624 = vmatprep.mubr.f32.mxu0 0.0
    %625 = vmatmul.mubr.f32.gmra.mrb[0].mxu0 %v62
    %v626 = vpop.f32.mrb[0].mxu0
    %v627 = vadd.f32 0.0, %v626
    %v628 = vpop.f32.mrb[0].mxu0
    %629 = vmatprep.mubr.f32.mxu0 0.0
    %630 = vmatmul.mubr.f32.gmra.mrb[0].mxu0 %v65
    %v631 = vpop.f32.mrb[0].mxu0
    %v632 = vadd.f32 0.0, %v631
    %v633 = vpop.f32.mrb[0].mxu0
    %634 = vdwg.mxu0
    %s635 = scalar_lea.vmem %s2, 48
    %v636 = vld [vmem:[%s635] sm:$0xff]
    %v637 = vld [vmem:[%s635 + $0x8] sm:$0xff]
    %v639 = vsel %vm53, %v636, 0
    %v642 = vsel %vm53, %v637, 0
    %644 = vmatprep.subr.mxu0 0.0
    %645 = vmatpush1.msra.mxu0 %v627
    %646 = vmatprep.subr.mxu0 0.0
    %647 = vmatpush1.msra.mxu0 %v632
    %648 = vmatprep.subr.mxu0 0.0
    %649 = vmatpush1.msra.mxu0 0.0
    %650 = vmatprep.subr.mxu0 0.0
    %651 = vmatpush1.msra.mxu0 0.0
    %652 = vmatprep.subr.mxu0 0.0
    %653 = vmatpush1.msra.mxu0 0.0
    %654 = vmatprep.subr.mxu0 0.0
    %655 = vmatpush1.msra.mxu0 0.0
    %656 = vmatprep.subr.mxu0 0.0
    %657 = vmatpush1.msra.mxu0 0.0
    %658 = vmatprep.subr.mxu0 0.0
    %659 = vmatpush1.msra.mxu0 0.0
    %660 = vmatprep.subr.mxu0 0.0
    %661 = vmatpush1.msra.mxu0 0.0
    %662 = vmatprep.subr.mxu0 0.0
    %663 = vmatpush1.msra.mxu0 0.0
    %664 = vmatprep.subr.mxu0 0.0
    %665 = vmatpush1.msra.mxu0 0.0
    %666 = vmatprep.subr.mxu0 0.0
    %667 = vmatpush1.msra.mxu0 0.0
    %668 = vmatprep.subr.mxu0 0.0
    %669 = vmatpush1.msra.mxu0 0.0
    %670 = vmatprep.subr.mxu0 0.0
    %671 = vmatpush1.msra.mxu0 0.0
    %672 = vmatprep.subr.mxu0 0.0
    %673 = vmatpush1.msra.mxu0 0.0
    %674 = vmatprep.subr.mxu0 0.0
    %675 = vmatpush1.msra.mxu0 0.0
    %676 = vmatprep.subr.mxu0 0.0
    %677 = vmatpush1.msra.mxu0 0.0
    %678 = vmatprep.subr.mxu0 0.0
    %679 = vmatpush1.msra.mxu0 0.0
    %680 = vmatprep.subr.mxu0 0.0
    %681 = vmatpush1.msra.mxu0 0.0
    %682 = vmatprep.subr.mxu0 0.0
    %683 = vmatpush1.msra.mxu0 0.0
    %684 = vmatprep.subr.mxu0 0.0
    %685 = vmatpush1.msra.mxu0 0.0
    %686 = vmatprep.subr.mxu0 0.0
    %687 = vmatpush1.msra.mxu0 0.0
    %688 = vmatprep.subr.mxu0 0.0
    %689 = vmatpush1.msra.mxu0 0.0
    %690 = vmatprep.subr.mxu0 0.0
    %691 = vmatpush1.msra.mxu0 0.0
    %692 = vmatprep.subr.mxu0 0.0
    %693 = vmatpush1.msra.mxu0 0.0
    %694 = vmatprep.subr.mxu0 0.0
    %695 = vmatpush1.msra.mxu0 0.0
    %696 = vmatprep.subr.mxu0 0.0
    %697 = vmatpush1.msra.mxu0 0.0
    %698 = vmatprep.subr.mxu0 0.0
    %699 = vmatpush1.msra.mxu0 0.0
    %700 = vmatprep.subr.mxu0 0.0
    %701 = vmatpush1.msra.mxu0 0.0
    %702 = vmatprep.subr.mxu0 0.0
    %703 = vmatpush1.msra.mxu0 0.0
    %704 = vmatprep.subr.mxu0 0.0
    %705 = vmatpush1.msra.mxu0 0.0
    %706 = vmatprep.subr.mxu0 0.0
    %707 = vmatpush1.msra.mxu0 0.0
    %708 = vmatprep.mubr.f32.mxu0 0.0
    %709 = vmatmul.mubr.f32.gmra.mrb[0].mxu0 %v639
    %v710 = vpop.f32.mrb[0].mxu0
    %v711 = vadd.f32 0.0, %v710
    %v712 = vpop.f32.mrb[0].mxu0
    %713 = vmatprep.mubr.f32.mxu0 0.0
    %714 = vmatmul.mubr.f32.gmra.mrb[0].mxu0 %v642
    %v715 = vpop.f32.mrb[0].mxu0
    %v716 = vadd.f32 0.0, %v715
    %v717 = vpop.f32.mrb[0].mxu0
    %718 = vdwg.mxu0
    %v719 = vadd.f32 %v553, %v711
    %v720 = vadd.f32 %v554, %v716
    %s721 = scalar_lea.vmem %s1, 128
    %v722 = vld [vmem:[%s721] sm:$0xff]
    %v723 = vld [vmem:[%s721 + $0x8] sm:$0xff]
    %v724 = vld [vmem:[%s721 + $0x10] sm:$0xff]
    %v725 = vld [vmem:[%s721 + $0x18] sm:$0xff]
    %726 = vmatprep.subr.mxu0 0.0
    %727 = vmatpush1.msra.mxu0 %v722
    %728 = vmatprep.subr.mxu0 0.0
    %729 = vmatpush1.msra.mxu0 %v723
    %730 = vmatprep.subr.mxu0 0.0
    %731 = vmatpush1.msra.mxu0 %v724
    %732 = vmatprep.subr.mxu0 0.0
    %733 = vmatpush1.msra.mxu0 %v725
    %734 = vmatprep.subr.mxu0 0.0
    %735 = vmatpush1.msra.mxu0 0.0
    %736 = vmatprep.subr.mxu0 0.0
    %737 = vmatpush1.msra.mxu0 0.0
    %738 = vmatprep.subr.mxu0 0.0
    %739 = vmatpush1.msra.mxu0 0.0
    %740 = vmatprep.subr.mxu0 0.0
    %741 = vmatpush1.msra.mxu0 0.0
    %742 = vmatprep.subr.mxu0 0.0
    %743 = vmatpush1.msra.mxu0 0.0
    %744 = vmatprep.subr.mxu0 0.0
    %745 = vmatpush1.msra.mxu0 0.0
    %746 = vmatprep.subr.mxu0 0.0
    %747 = vmatpush1.msra.mxu0 0.0
    %748 = vmatprep.subr.mxu0 0.0
    %749 = vmatpush1.msra.mxu0 0.0
    %750 = vmatprep.subr.mxu0 0.0
    %751 = vmatpush1.msra.mxu0 0.0
    %752 = vmatprep.subr.mxu0 0.0
    %753 = vmatpush1.msra.mxu0 0.0
    %754 = vmatprep.subr.mxu0 0.0
    %755 = vmatpush1.msra.mxu0 0.0
    %756 = vmatprep.subr.mxu0 0.0
    %757 = vmatpush1.msra.mxu0 0.0
    %758 = vmatprep.subr.mxu0 0.0
    %759 = vmatpush1.msra.mxu0 0.0
    %760 = vmatprep.subr.mxu0 0.0
    %761 = vmatpush1.msra.mxu0 0.0
    %762 = vmatprep.subr.mxu0 0.0
    %763 = vmatpush1.msra.mxu0 0.0
    %764 = vmatprep.subr.mxu0 0.0
    %765 = vmatpush1.msra.mxu0 0.0
    %766 = vmatprep.subr.mxu0 0.0
    %767 = vmatpush1.msra.mxu0 0.0
    %768 = vmatprep.subr.mxu0 0.0
    %769 = vmatpush1.msra.mxu0 0.0
    %770 = vmatprep.subr.mxu0 0.0
    %771 = vmatpush1.msra.mxu0 0.0
    %772 = vmatprep.subr.mxu0 0.0
    %773 = vmatpush1.msra.mxu0 0.0
    %774 = vmatprep.subr.mxu0 0.0
    %775 = vmatpush1.msra.mxu0 0.0
    %776 = vmatprep.subr.mxu0 0.0
    %777 = vmatpush1.msra.mxu0 0.0
    %778 = vmatprep.subr.mxu0 0.0
    %779 = vmatpush1.msra.mxu0 0.0
    %780 = vmatprep.subr.mxu0 0.0
    %781 = vmatpush1.msra.mxu0 0.0
    %782 = vmatprep.subr.mxu0 0.0
    %783 = vmatpush1.msra.mxu0 0.0
    %784 = vmatprep.subr.mxu0 0.0
    %785 = vmatpush1.msra.mxu0 0.0
    %786 = vmatprep.subr.mxu0 0.0
    %787 = vmatpush1.msra.mxu0 0.0
    %788 = vmatprep.subr.mxu0 0.0
    %789 = vmatpush1.msra.mxu0 0.0
    %790 = vmatprep.mubr.f32.mxu0 0.0
    %791 = vmatmul.mubr.f32.gmra.mrb[0].mxu0 %v62
    %v792 = vpop.f32.mrb[0].mxu0
    %v793 = vadd.f32 0.0, %v792
    %v794 = vpop.f32.mrb[0].mxu0
    %795 = vmatprep.mubr.f32.mxu0 0.0
    %796 = vmatmul.mubr.f32.gmra.mrb[0].mxu0 %v65
    %v797 = vpop.f32.mrb[0].mxu0
    %v798 = vadd.f32 0.0, %v797
    %v799 = vpop.f32.mrb[0].mxu0
    %800 = vdwg.mxu0
    %s801 = scalar_lea.vmem %s2, 64
    %v802 = vld [vmem:[%s801] sm:$0xff]
    %v803 = vld [vmem:[%s801 + $0x8] sm:$0xff]
    %v805 = vsel %vm53, %v802, 0
    %v808 = vsel %vm53, %v803, 0
    %810 = vmatprep.subr.mxu0 0.0
    %811 = vmatpush1.msra.mxu0 %v793
    %812 = vmatprep.subr.mxu0 0.0
    %813 = vmatpush1.msra.mxu0 %v798
    %814 = vmatprep.subr.mxu0 0.0
    %815 = vmatpush1.msra.mxu0 0.0
    %816 = vmatprep.subr.mxu0 0.0
    %817 = vmatpush1.msra.mxu0 0.0
    %818 = vmatprep.subr.mxu0 0.0
    %819 = vmatpush1.msra.mxu0 0.0
    %820 = vmatprep.subr.mxu0 0.0
    %821 = vmatpush1.msra.mxu0 0.0
    %822 = vmatprep.subr.mxu0 0.0
    %823 = vmatpush1.msra.mxu0 0.0
    %824 = vmatprep.subr.mxu0 0.0
    %825 = vmatpush1.msra.mxu0 0.0
    %826 = vmatprep.subr.mxu0 0.0
    %827 = vmatpush1.msra.mxu0 0.0
    %828 = vmatprep.subr.mxu0 0.0
    %829 = vmatpush1.msra.mxu0 0.0
    %830 = vmatprep.subr.mxu0 0.0
    %831 = vmatpush1.msra.mxu0 0.0
    %832 = vmatprep.subr.mxu0 0.0
    %833 = vmatpush1.msra.mxu0 0.0
    %834 = vmatprep.subr.mxu0 0.0
    %835 = vmatpush1.msra.mxu0 0.0
    %836 = vmatprep.subr.mxu0 0.0
    %837 = vmatpush1.msra.mxu0 0.0
    %838 = vmatprep.subr.mxu0 0.0
    %839 = vmatpush1.msra.mxu0 0.0
    %840 = vmatprep.subr.mxu0 0.0
    %841 = vmatpush1.msra.mxu0 0.0
    %842 = vmatprep.subr.mxu0 0.0
    %843 = vmatpush1.msra.mxu0 0.0
    %844 = vmatprep.subr.mxu0 0.0
    %845 = vmatpush1.msra.mxu0 0.0
    %846 = vmatprep.subr.mxu0 0.0
    %847 = vmatpush1.msra.mxu0 0.0
    %848 = vmatprep.subr.mxu0 0.0
    %849 = vmatpush1.msra.mxu0 0.0
    %850 = vmatprep.subr.mxu0 0.0
    %851 = vmatpush1.msra.mxu0 0.0
    %852 = vmatprep.subr.mxu0 0.0
    %853 = vmatpush1.msra.mxu0 0.0
    %854 = vmatprep.subr.mxu0 0.0
    %855 = vmatpush1.msra.mxu0 0.0
    %856 = vmatprep.subr.mxu0 0.0
    %857 = vmatpush1.msra.mxu0 0.0
    %858 = vmatprep.subr.mxu0 0.0
    %859 = vmatpush1.msra.mxu0 0.0
    %860 = vmatprep.subr.mxu0 0.0
    %861 = vmatpush1.msra.mxu0 0.0
    %862 = vmatprep.subr.mxu0 0.0
    %863 = vmatpush1.msra.mxu0 0.0
    %864 = vmatprep.subr.mxu0 0.0
    %865 = vmatpush1.msra.mxu0 0.0
    %866 = vmatprep.subr.mxu0 0.0
    %867 = vmatpush1.msra.mxu0 0.0
    %868 = vmatprep.subr.mxu0 0.0
    %869 = vmatpush1.msra.mxu0 0.0
    %870 = vmatprep.subr.mxu0 0.0
    %871 = vmatpush1.msra.mxu0 0.0
    %872 = vmatprep.subr.mxu0 0.0
    %873 = vmatpush1.msra.mxu0 0.0
    %874 = vmatprep.mubr.f32.mxu0 0.0
    %875 = vmatmul.mubr.f32.gmra.mrb[0].mxu0 %v805
    %v876 = vpop.f32.mrb[0].mxu0
    %v877 = vadd.f32 0.0, %v876
    %v878 = vpop.f32.mrb[0].mxu0
    %879 = vmatprep.mubr.f32.mxu0 0.0
    %880 = vmatmul.mubr.f32.gmra.mrb[0].mxu0 %v808
    %v881 = vpop.f32.mrb[0].mxu0
    %v882 = vadd.f32 0.0, %v881
    %v883 = vpop.f32.mrb[0].mxu0
    %884 = vdwg.mxu0
    %v885 = vadd.f32 %v719, %v877
    %v886 = vadd.f32 %v720, %v882
    %s887 = scalar_lea.vmem %s1, 160
    %v888 = vld [vmem:[%s887] sm:$0xff]
    %v889 = vld [vmem:[%s887 + $0x8] sm:$0xff]
    %v890 = vld [vmem:[%s887 + $0x10] sm:$0xff]
    %v891 = vld [vmem:[%s887 + $0x18] sm:$0xff]
    %892 = vmatprep.subr.mxu0 0.0
    %893 = vmatpush1.msra.mxu0 %v888
    %894 = vmatprep.subr.mxu0 0.0
    %895 = vmatpush1.msra.mxu0 %v889
    %896 = vmatprep.subr.mxu0 0.0
    %897 = vmatpush1.msra.mxu0 %v890
    %898 = vmatprep.subr.mxu0 0.0
    %899 = vmatpush1.msra.mxu0 %v891
    %900 = vmatprep.subr.mxu0 0.0
    %901 = vmatpush1.msra.mxu0 0.0
    %902 = vmatprep.subr.mxu0 0.0
    %903 = vmatpush1.msra.mxu0 0.0
    %904 = vmatprep.subr.mxu0 0.0
    %905 = vmatpush1.msra.mxu0 0.0
    %906 = vmatprep.subr.mxu0 0.0
    %907 = vmatpush1.msra.mxu0 0.0
    %908 = vmatprep.subr.mxu0 0.0
    %909 = vmatpush1.msra.mxu0 0.0
    %910 = vmatprep.subr.mxu0 0.0
    %911 = vmatpush1.msra.mxu0 0.0
    %912 = vmatprep.subr.mxu0 0.0
    %913 = vmatpush1.msra.mxu0 0.0
    %914 = vmatprep.subr.mxu0 0.0
    %915 = vmatpush1.msra.mxu0 0.0
    %916 = vmatprep.subr.mxu0 0.0
    %917 = vmatpush1.msra.mxu0 0.0
    %918 = vmatprep.subr.mxu0 0.0
    %919 = vmatpush1.msra.mxu0 0.0
    %920 = vmatprep.subr.mxu0 0.0
    %921 = vmatpush1.msra.mxu0 0.0
    %922 = vmatprep.subr.mxu0 0.0
    %923 = vmatpush1.msra.mxu0 0.0
    %924 = vmatprep.subr.mxu0 0.0
    %925 = vmatpush1.msra.mxu0 0.0
    %926 = vmatprep.subr.mxu0 0.0
    %927 = vmatpush1.msra.mxu0 0.0
    %928 = vmatprep.subr.mxu0 0.0
    %929 = vmatpush1.msra.mxu0 0.0
    %930 = vmatprep.subr.mxu0 0.0
    %931 = vmatpush1.msra.mxu0 0.0
    %932 = vmatprep.subr.mxu0 0.0
    %933 = vmatpush1.msra.mxu0 0.0
    %934 = vmatprep.subr.mxu0 0.0
    %935 = vmatpush1.msra.mxu0 0.0
    %936 = vmatprep.subr.mxu0 0.0
    %937 = vmatpush1.msra.mxu0 0.0
    %938 = vmatprep.subr.mxu0 0.0
    %939 = vmatpush1.msra.mxu0 0.0
    %940 = vmatprep.subr.mxu0 0.0
    %941 = vmatpush1.msra.mxu0 0.0
    %942 = vmatprep.subr.mxu0 0.0
    %943 = vmatpush1.msra.mxu0 0.0
    %944 = vmatprep.subr.mxu0 0.0
    %945 = vmatpush1.msra.mxu0 0.0
    %946 = vmatprep.subr.mxu0 0.0
    %947 = vmatpush1.msra.mxu0 0.0
    %948 = vmatprep.subr.mxu0 0.0
    %949 = vmatpush1.msra.mxu0 0.0
    %950 = vmatprep.subr.mxu0 0.0
    %951 = vmatpush1.msra.mxu0 0.0
    %952 = vmatprep.subr.mxu0 0.0
    %953 = vmatpush1.msra.mxu0 0.0
    %954 = vmatprep.subr.mxu0 0.0
    %955 = vmatpush1.msra.mxu0 0.0
    %956 = vmatprep.mubr.f32.mxu0 0.0
    %957 = vmatmul.mubr.f32.gmra.mrb[0].mxu0 %v62
    %v958 = vpop.f32.mrb[0].mxu0
    %v959 = vadd.f32 0.0, %v958
    %v960 = vpop.f32.mrb[0].mxu0
    %961 = vmatprep.mubr.f32.mxu0 0.0
    %962 = vmatmul.mubr.f32.gmra.mrb[0].mxu0 %v65
    %v963 = vpop.f32.mrb[0].mxu0
    %v964 = vadd.f32 0.0, %v963
    %v965 = vpop.f32.mrb[0].mxu0
    %966 = vdwg.mxu0
    %s967 = scalar_lea.vmem %s2, 80
    %v968 = vld [vmem:[%s967] sm:$0xff]
    %v969 = vld [vmem:[%s967 + $0x8] sm:$0xff]
    %v971 = vsel %vm53, %v968, 0
    %v974 = vsel %vm53, %v969, 0
    %976 = vmatprep.subr.mxu0 0.0
    %977 = vmatpush1.msra.mxu0 %v959
    %978 = vmatprep.subr.mxu0 0.0
    %979 = vmatpush1.msra.mxu0 %v964
    %980 = vmatprep.subr.mxu0 0.0
    %981 = vmatpush1.msra.mxu0 0.0
    %982 = vmatprep.subr.mxu0 0.0
    %983 = vmatpush1.msra.mxu0 0.0
    %984 = vmatprep.subr.mxu0 0.0
    %985 = vmatpush1.msra.mxu0 0.0
    %986 = vmatprep.subr.mxu0 0.0
    %987 = vmatpush1.msra.mxu0 0.0
    %988 = vmatprep.subr.mxu0 0.0
    %989 = vmatpush1.msra.mxu0 0.0
    %990 = vmatprep.subr.mxu0 0.0
    %991 = vmatpush1.msra.mxu0 0.0
    %992 = vmatprep.subr.mxu0 0.0
    %993 = vmatpush1.msra.mxu0 0.0
    %994 = vmatprep.subr.mxu0 0.0
    %995 = vmatpush1.msra.mxu0 0.0
    %996 = vmatprep.subr.mxu0 0.0
    %997 = vmatpush1.msra.mxu0 0.0
    %998 = vmatprep.subr.mxu0 0.0
    %999 = vmatpush1.msra.mxu0 0.0
    %1000 = vmatprep.subr.mxu0 0.0
    %1001 = vmatpush1.msra.mxu0 0.0
    %1002 = vmatprep.subr.mxu0 0.0
    %1003 = vmatpush1.msra.mxu0 0.0
    %1004 = vmatprep.subr.mxu0 0.0
    %1005 = vmatpush1.msra.mxu0 0.0
    %1006 = vmatprep.subr.mxu0 0.0
    %1007 = vmatpush1.msra.mxu0 0.0
    %1008 = vmatprep.subr.mxu0 0.0
    %1009 = vmatpush1.msra.mxu0 0.0
    %1010 = vmatprep.subr.mxu0 0.0
    %1011 = vmatpush1.msra.mxu0 0.0
    %1012 = vmatprep.subr.mxu0 0.0
    %1013 = vmatpush1.msra.mxu0 0.0
    %1014 = vmatprep.subr.mxu0 0.0
    %1015 = vmatpush1.msra.mxu0 0.0
    %1016 = vmatprep.subr.mxu0 0.0
    %1017 = vmatpush1.msra.mxu0 0.0
    %1018 = vmatprep.subr.mxu0 0.0
    %1019 = vmatpush1.msra.mxu0 0.0
    %1020 = vmatprep.subr.mxu0 0.0
    %1021 = vmatpush1.msra.mxu0 0.0
    %1022 = vmatprep.subr.mxu0 0.0
    %1023 = vmatpush1.msra.mxu0 0.0
    %1024 = vmatprep.subr.mxu0 0.0
    %1025 = vmatpush1.msra.mxu0 0.0
    %1026 = vmatprep.subr.mxu0 0.0
    %1027 = vmatpush1.msra.mxu0 0.0
    %1028 = vmatprep.subr.mxu0 0.0
    %1029 = vmatpush1.msra.mxu0 0.0
    %1030 = vmatprep.subr.mxu0 0.0
    %1031 = vmatpush1.msra.mxu0 0.0
    %1032 = vmatprep.subr.mxu0 0.0
    %1033 = vmatpush1.msra.mxu0 0.0
    %1034 = vmatprep.subr.mxu0 0.0
    %1035 = vmatpush1.msra.mxu0 0.0
    %1036 = vmatprep.subr.mxu0 0.0
    %1037 = vmatpush1.msra.mxu0 0.0
    %1038 = vmatprep.subr.mxu0 0.0
    %1039 = vmatpush1.msra.mxu0 0.0
    %1040 = vmatprep.mubr.f32.mxu0 0.0
    %1041 = vmatmul.mubr.f32.gmra.mrb[0].mxu0 %v971
    %v1042 = vpop.f32.mrb[0].mxu0
    %v1043 = vadd.f32 0.0, %v1042
    %v1044 = vpop.f32.mrb[0].mxu0
    %1045 = vmatprep.mubr.f32.mxu0 0.0
    %1046 = vmatmul.mubr.f32.gmra.mrb[0].mxu0 %v974
    %v1047 = vpop.f32.mrb[0].mxu0
    %v1048 = vadd.f32 0.0, %v1047
    %v1049 = vpop.f32.mrb[0].mxu0
    %1050 = vdwg.mxu0
    %v1051 = vadd.f32 %v885, %v1043
    %v1052 = vadd.f32 %v886, %v1048
    %s1053 = scalar_lea.vmem %s1, 192
    %v1054 = vld [vmem:[%s1053] sm:$0xff]
    %v1055 = vld [vmem:[%s1053 + $0x8] sm:$0xff]
    %v1056 = vld [vmem:[%s1053 + $0x10] sm:$0xff]
    %v1057 = vld [vmem:[%s1053 + $0x18] sm:$0xff]
    %1058 = vmatprep.subr.mxu0 0.0
    %1059 = vmatpush1.msra.mxu0 %v1054
    %1060 = vmatprep.subr.mxu0 0.0
    %1061 = vmatpush1.msra.mxu0 %v1055
    %1062 = vmatprep.subr.mxu0 0.0
    %1063 = vmatpush1.msra.mxu0 %v1056
    %1064 = vmatprep.subr.mxu0 0.0
    %1065 = vmatpush1.msra.mxu0 %v1057
    %1066 = vmatprep.subr.mxu0 0.0
    %1067 = vmatpush1.msra.mxu0 0.0
    %1068 = vmatprep.subr.mxu0 0.0
    %1069 = vmatpush1.msra.mxu0 0.0
    %1070 = vmatprep.subr.mxu0 0.0
    %1071 = vmatpush1.msra.mxu0 0.0
    %1072 = vmatprep.subr.mxu0 0.0
    %1073 = vmatpush1.msra.mxu0 0.0
    %1074 = vmatprep.subr.mxu0 0.0
    %1075 = vmatpush1.msra.mxu0 0.0
    %1076 = vmatprep.subr.mxu0 0.0
    %1077 = vmatpush1.msra.mxu0 0.0
    %1078 = vmatprep.subr.mxu0 0.0
    %1079 = vmatpush1.msra.mxu0 0.0
    %1080 = vmatprep.subr.mxu0 0.0
    %1081 = vmatpush1.msra.mxu0 0.0
    %1082 = vmatprep.subr.mxu0 0.0
    %1083 = vmatpush1.msra.mxu0 0.0
    %1084 = vmatprep.subr.mxu0 0.0
    %1085 = vmatpush1.msra.mxu0 0.0
    %1086 = vmatprep.subr.mxu0 0.0
    %1087 = vmatpush1.msra.mxu0 0.0
    %1088 = vmatprep.subr.mxu0 0.0
    %1089 = vmatpush1.msra.mxu0 0.0
    %1090 = vmatprep.subr.mxu0 0.0
    %1091 = vmatpush1.msra.mxu0 0.0
    %1092 = vmatprep.subr.mxu0 0.0
    %1093 = vmatpush1.msra.mxu0 0.0
    %1094 = vmatprep.subr.mxu0 0.0
    %1095 = vmatpush1.msra.mxu0 0.0
    %1096 = vmatprep.subr.mxu0 0.0
    %1097 = vmatpush1.msra.mxu0 0.0
    %1098 = vmatprep.subr.mxu0 0.0
    %1099 = vmatpush1.msra.mxu0 0.0
    %1100 = vmatprep.subr.mxu0 0.0
    %1101 = vmatpush1.msra.mxu0 0.0
    %1102 = vmatprep.subr.mxu0 0.0
    %1103 = vmatpush1.msra.mxu0 0.0
    %1104 = vmatprep.subr.mxu0 0.0
    %1105 = vmatpush1.msra.mxu0 0.0
    %1106 = vmatprep.subr.mxu0 0.0
    %1107 = vmatpush1.msra.mxu0 0.0
    %1108 = vmatprep.subr.mxu0 0.0
    %1109 = vmatpush1.msra.mxu0 0.0
    %1110 = vmatprep.subr.mxu0 0.0
    %1111 = vmatpush1.msra.mxu0 0.0
    %1112 = vmatprep.subr.mxu0 0.0
    %1113 = vmatpush1.msra.mxu0 0.0
    %1114 = vmatprep.subr.mxu0 0.0
    %1115 = vmatpush1.msra.mxu0 0.0
    %1116 = vmatprep.subr.mxu0 0.0
    %1117 = vmatpush1.msra.mxu0 0.0
    %1118 = vmatprep.subr.mxu0 0.0
    %1119 = vmatpush1.msra.mxu0 0.0
    %1120 = vmatprep.subr.mxu0 0.0
    %1121 = vmatpush1.msra.mxu0 0.0
    %1122 = vmatprep.mubr.f32.mxu0 0.0
    %1123 = vmatmul.mubr.f32.gmra.mrb[0].mxu0 %v62
    %v1124 = vpop.f32.mrb[0].mxu0
    %v1125 = vadd.f32 0.0, %v1124
    %v1126 = vpop.f32.mrb[0].mxu0
    %1127 = vmatprep.mubr.f32.mxu0 0.0
    %1128 = vmatmul.mubr.f32.gmra.mrb[0].mxu0 %v65
    %v1129 = vpop.f32.mrb[0].mxu0
    %v1130 = vadd.f32 0.0, %v1129
    %v1131 = vpop.f32.mrb[0].mxu0
    %1132 = vdwg.mxu0
    %s1133 = scalar_lea.vmem %s2, 96
    %v1134 = vld [vmem:[%s1133] sm:$0xff]
    %v1135 = vld [vmem:[%s1133 + $0x8] sm:$0xff]
    %v1137 = vsel %vm53, %v1134, 0
    %v1140 = vsel %vm53, %v1135, 0
    %1142 = vmatprep.subr.mxu0 0.0
    %1143 = vmatpush1.msra.mxu0 %v1125
    %1144 = vmatprep.subr.mxu0 0.0
    %1145 = vmatpush1.msra.mxu0 %v1130
    %1146 = vmatprep.subr.mxu0 0.0
    %1147 = vmatpush1.msra.mxu0 0.0
    %1148 = vmatprep.subr.mxu0 0.0
    %1149 = vmatpush1.msra.mxu0 0.0
    %1150 = vmatprep.subr.mxu0 0.0
    %1151 = vmatpush1.msra.mxu0 0.0
    %1152 = vmatprep.subr.mxu0 0.0
    %1153 = vmatpush1.msra.mxu0 0.0
    %1154 = vmatprep.subr.mxu0 0.0
    %1155 = vmatpush1.msra.mxu0 0.0
    %1156 = vmatprep.subr.mxu0 0.0
    %1157 = vmatpush1.msra.mxu0 0.0
    %1158 = vmatprep.subr.mxu0 0.0
    %1159 = vmatpush1.msra.mxu0 0.0
    %1160 = vmatprep.subr.mxu0 0.0
    %1161 = vmatpush1.msra.mxu0 0.0
    %1162 = vmatprep.subr.mxu0 0.0
    %1163 = vmatpush1.msra.mxu0 0.0
    %1164 = vmatprep.subr.mxu0 0.0
    %1165 = vmatpush1.msra.mxu0 0.0
    %1166 = vmatprep.subr.mxu0 0.0
    %1167 = vmatpush1.msra.mxu0 0.0
    %1168 = vmatprep.subr.mxu0 0.0
    %1169 = vmatpush1.msra.mxu0 0.0
    %1170 = vmatprep.subr.mxu0 0.0
    %1171 = vmatpush1.msra.mxu0 0.0
    %1172 = vmatprep.subr.mxu0 0.0
    %1173 = vmatpush1.msra.mxu0 0.0
    %1174 = vmatprep.subr.mxu0 0.0
    %1175 = vmatpush1.msra.mxu0 0.0
    %1176 = vmatprep.subr.mxu0 0.0
    %1177 = vmatpush1.msra.mxu0 0.0
    %1178 = vmatprep.subr.mxu0 0.0
    %1179 = vmatpush1.msra.mxu0 0.0
    %1180 = vmatprep.subr.mxu0 0.0
    %1181 = vmatpush1.msra.mxu0 0.0
    %1182 = vmatprep.subr.mxu0 0.0
    %1183 = vmatpush1.msra.mxu0 0.0
    %1184 = vmatprep.subr.mxu0 0.0
    %1185 = vmatpush1.msra.mxu0 0.0
    %1186 = vmatprep.subr.mxu0 0.0
    %1187 = vmatpush1.msra.mxu0 0.0
    %1188 = vmatprep.subr.mxu0 0.0
    %1189 = vmatpush1.msra.mxu0 0.0
    %1190 = vmatprep.subr.mxu0 0.0
    %1191 = vmatpush1.msra.mxu0 0.0
    %1192 = vmatprep.subr.mxu0 0.0
    %1193 = vmatpush1.msra.mxu0 0.0
    %1194 = vmatprep.subr.mxu0 0.0
    %1195 = vmatpush1.msra.mxu0 0.0
    %1196 = vmatprep.subr.mxu0 0.0
    %1197 = vmatpush1.msra.mxu0 0.0
    %1198 = vmatprep.subr.mxu0 0.0
    %1199 = vmatpush1.msra.mxu0 0.0
    %1200 = vmatprep.subr.mxu0 0.0
    %1201 = vmatpush1.msra.mxu0 0.0
    %1202 = vmatprep.subr.mxu0 0.0
    %1203 = vmatpush1.msra.mxu0 0.0
    %1204 = vmatprep.subr.mxu0 0.0
    %1205 = vmatpush1.msra.mxu0 0.0
    %1206 = vmatprep.mubr.f32.mxu0 0.0
    %1207 = vmatmul.mubr.f32.gmra.mrb[0].mxu0 %v1137
    %v1208 = vpop.f32.mrb[0].mxu0
    %v1209 = vadd.f32 0.0, %v1208
    %v1210 = vpop.f32.mrb[0].mxu0
    %1211 = vmatprep.mubr.f32.mxu0 0.0
    %1212 = vmatmul.mubr.f32.gmra.mrb[0].mxu0 %v1140
    %v1213 = vpop.f32.mrb[0].mxu0
    %v1214 = vadd.f32 0.0, %v1213
    %v1215 = vpop.f32.mrb[0].mxu0
    %1216 = vdwg.mxu0
    %v1217 = vadd.f32 %v1051, %v1209
    %v1218 = vadd.f32 %v1052, %v1214
    %v1219 = vstv %s19
    %v1220 = vadd.f32 %v1217, %v1219
    %v1221 = vadd.f32 %v1218, %v1219
    %v1222 = vxor.u32 %v1220, 2147483648
    %v1223 = vxor.u32 %v1221, 2147483648
    %v1224 = vmul.f32 %v1222, 1.442695
    %v1225 = vpow.pop %v1224
    %v1226 = vmul.f32 %v1223, 1.442695
    %v1227 = vpow.pop %v1226
    %v1228 = vadd.f32 %v1225, 1.0
    %v1229 = vadd.f32 %v1227, 1.0
    %v1230 = vrcp.pop %v1228
    %v1231 = vmul.f32 1.0, %v1230
    %v1232 = vrcp.pop %v1229
    %v1233 = vmul.f32 1.0, %v1232
    %1234 = vst.msk [vmem:[#allocation3] sm:$0xff] %vm53, %v1231
    %1235 = vst.msk [vmem:[#allocation3 + $0x8] sm:$0xff] %vm53, %v1233
    %s1236 = scalar_lea.vmem %s3, 64
    %v1237 = vld [vmem:[%s1236] sm:$0xff]
    %v1238 = vld [vmem:[%s1236 + $0x8] sm:$0xff]
    %s1239 = scalar_lea.vmem %s3, 80
    %v1240 = vld [vmem:[%s1239] sm:$0xff]
    %v1241 = vld [vmem:[%s1239 + $0x8] sm:$0xff]
    %v1242 = vadd.f32 %v1237, %v1240
    %v1243 = vadd.f32 %v1238, %v1241
    %v1244 = vmax.f32 %v1237, %v1240
    %v1245 = vmax.f32 %v1238, %v1241
    %s1246 = scalar_lea.vmem %s3, 96
    %v1247 = vld [vmem:[%s1246] sm:$0xff]
    %v1248 = vld [vmem:[%s1246 + $0x8] sm:$0xff]
    %v1249 = vadd.f32 %v1242, %v1247
    %v1250 = vadd.f32 %v1243, %v1248
    %v1251 = vmax.f32 %v1244, %v1247
    %v1252 = vmax.f32 %v1245, %v1248
    %s1253 = scalar_lea.vmem %s3, 112
    %v1254 = vld [vmem:[%s1253] sm:$0xff]
    %v1255 = vld [vmem:[%s1253 + $0x8] sm:$0xff]
    %v1256 = vadd.f32 %v1249, %v1254
    %v1257 = vadd.f32 %v1250, %v1255
    %v1258 = vmax.f32 %v1251, %v1254
    %v1259 = vmax.f32 %v1252, %v1255
    %v1260 = vmul.f32 %v1256, 0.25
    %v1261 = vmul.f32 %v1257, 0.25
    %1264 = vrot.lane.b32.xlu0 %v1258, 16
    %v1265 = vpop.permute.xlu0 %1264
    %1266 = vrot.lane.b32.xlu0 %v1259, 16
    %v1267 = vpop.permute.xlu0 %1266
    %v1270 = vsel %vm53, %v1260, %v1265
    %v1271 = vsel %vm53, %v1261, %v1267
    %v1272 = vld [vmem:[%s1] sm:$0xff]
    %v1273 = vld [vmem:[%s1 + $0x8] sm:$0xff]
    %v1274 = vld [vmem:[%s1 + $0x10] sm:$0xff]
    %v1275 = vld [vmem:[%s1 + $0x18] sm:$0xff]
    %v1277 = vsel %vm60, %v1270, 0
    %v1280 = vsel %vm60, %v1271, 0
    %1282 = vmatprep.subr.mxu0 0.0
    %1283 = vmatpush1.msra.mxu0 %v1272
    %1284 = vmatprep.subr.mxu0 0.0
    %1285 = vmatpush1.msra.mxu0 %v1273
    %1286 = vmatprep.subr.mxu0 0.0
    %1287 = vmatpush1.msra.mxu0 %v1274
    %1288 = vmatprep.subr.mxu0 0.0
    %1289 = vmatpush1.msra.mxu0 %v1275
    %1290 = vmatprep.subr.mxu0 0.0
    %1291 = vmatpush1.msra.mxu0 0.0
    %1292 = vmatprep.subr.mxu0 0.0
    %1293 = vmatpush1.msra.mxu0 0.0
    %1294 = vmatprep.subr.mxu0 0.0
    %1295 = vmatpush1.msra.mxu0 0.0
    %1296 = vmatprep.subr.mxu0 0.0
    %1297 = vmatpush1.msra.mxu0 0.0
    %1298 = vmatprep.subr.mxu0 0.0
    %1299 = vmatpush1.msra.mxu0 0.0
    %1300 = vmatprep.subr.mxu0 0.0
    %1301 = vmatpush1.msra.mxu0 0.0
    %1302 = vmatprep.subr.mxu0 0.0
    %1303 = vmatpush1.msra.mxu0 0.0
    %1304 = vmatprep.subr.mxu0 0.0
    %1305 = vmatpush1.msra.mxu0 0.0
    %1306 = vmatprep.subr.mxu0 0.0
    %1307 = vmatpush1.msra.mxu0 0.0
    %1308 = vmatprep.subr.mxu0 0.0
    %1309 = vmatpush1.msra.mxu0 0.0
    %1310 = vmatprep.subr.mxu0 0.0
    %1311 = vmatpush1.msra.mxu0 0.0
    %1312 = vmatprep.subr.mxu0 0.0
    %1313 = vmatpush1.msra.mxu0 0.0
    %1314 = vmatprep.subr.mxu0 0.0
    %1315 = vmatpush1.msra.mxu0 0.0
    %1316 = vmatprep.subr.mxu0 0.0
    %1317 = vmatpush1.msra.mxu0 0.0
    %1318 = vmatprep.subr.mxu0 0.0
    %1319 = vmatpush1.msra.mxu0 0.0
    %1320 = vmatprep.subr.mxu0 0.0
    %1321 = vmatpush1.msra.mxu0 0.0
    %1322 = vmatprep.subr.mxu0 0.0
    %1323 = vmatpush1.msra.mxu0 0.0
    %1324 = vmatprep.subr.mxu0 0.0
    %1325 = vmatpush1.msra.mxu0 0.0
    %1326 = vmatprep.subr.mxu0 0.0
    %1327 = vmatpush1.msra.mxu0 0.0
    %1328 = vmatprep.subr.mxu0 0.0
    %1329 = vmatpush1.msra.mxu0 0.0
    %1330 = vmatprep.subr.mxu0 0.0
    %1331 = vmatpush1.msra.mxu0 0.0
    %1332 = vmatprep.subr.mxu0 0.0
    %1333 = vmatpush1.msra.mxu0 0.0
    %1334 = vmatprep.subr.mxu0 0.0
    %1335 = vmatpush1.msra.mxu0 0.0
    %1336 = vmatprep.subr.mxu0 0.0
    %1337 = vmatpush1.msra.mxu0 0.0
    %1338 = vmatprep.subr.mxu0 0.0
    %1339 = vmatpush1.msra.mxu0 0.0
    %1340 = vmatprep.subr.mxu0 0.0
    %1341 = vmatpush1.msra.mxu0 0.0
    %1342 = vmatprep.subr.mxu0 0.0
    %1343 = vmatpush1.msra.mxu0 0.0
    %1344 = vmatprep.subr.mxu0 0.0
    %1345 = vmatpush1.msra.mxu0 0.0
    %1346 = vmatprep.mubr.f32.mxu0 0.0
    %1347 = vmatmul.mubr.f32.gmra.mrb[0].mxu0 %v1277
    %v1348 = vpop.f32.mrb[0].mxu0
    %v1349 = vadd.f32 0.0, %v1348
    %v1350 = vpop.f32.mrb[0].mxu0
    %1351 = vmatprep.mubr.f32.mxu0 0.0
    %1352 = vmatmul.mubr.f32.gmra.mrb[0].mxu0 %v1280
    %v1353 = vpop.f32.mrb[0].mxu0
    %v1354 = vadd.f32 0.0, %v1353
    %v1355 = vpop.f32.mrb[0].mxu0
    %1356 = vdwg.mxu0
    %v1357 = vld [vmem:[%s2] sm:$0xff]
    %v1358 = vld [vmem:[%s2 + $0x8] sm:$0xff]
    %v1359 = vld [vmem:[%s144] sm:$0xff]
    %v1360 = vld [vmem:[%s144 + $0x8] sm:$0xff]
    %v1361 = vld [vmem:[%s144 + $0x10] sm:$0xff]
    %v1362 = vld [vmem:[%s144 + $0x18] sm:$0xff]
    %1363 = vmatprep.subr.mxu0 0.0
    %1364 = vmatpush1.msra.mxu0 %v1359
    %1365 = vmatprep.subr.mxu0 0.0
    %1366 = vmatpush1.msra.mxu0 %v1360
    %1367 = vmatprep.subr.mxu0 0.0
    %1368 = vmatpush1.msra.mxu0 %v1361
    %1369 = vmatprep.subr.mxu0 0.0
    %1370 = vmatpush1.msra.mxu0 %v1362
    %1371 = vmatprep.subr.mxu0 0.0
    %1372 = vmatpush1.msra.mxu0 0.0
    %1373 = vmatprep.subr.mxu0 0.0
    %1374 = vmatpush1.msra.mxu0 0.0
    %1375 = vmatprep.subr.mxu0 0.0
    %1376 = vmatpush1.msra.mxu0 0.0
    %1377 = vmatprep.subr.mxu0 0.0
    %1378 = vmatpush1.msra.mxu0 0.0
    %1379 = vmatprep.subr.mxu0 0.0
    %1380 = vmatpush1.msra.mxu0 0.0
    %1381 = vmatprep.subr.mxu0 0.0
    %1382 = vmatpush1.msra.mxu0 0.0
    %1383 = vmatprep.subr.mxu0 0.0
    %1384 = vmatpush1.msra.mxu0 0.0
    %1385 = vmatprep.subr.mxu0 0.0
    %1386 = vmatpush1.msra.mxu0 0.0
    %1387 = vmatprep.subr.mxu0 0.0
    %1388 = vmatpush1.msra.mxu0 0.0
    %1389 = vmatprep.subr.mxu0 0.0
    %1390 = vmatpush1.msra.mxu0 0.0
    %1391 = vmatprep.subr.mxu0 0.0
    %1392 = vmatpush1.msra.mxu0 0.0
    %1393 = vmatprep.subr.mxu0 0.0
    %1394 = vmatpush1.msra.mxu0 0.0
    %1395 = vmatprep.subr.mxu0 0.0
    %1396 = vmatpush1.msra.mxu0 0.0
    %1397 = vmatprep.subr.mxu0 0.0
    %1398 = vmatpush1.msra.mxu0 0.0
    %1399 = vmatprep.subr.mxu0 0.0
    %1400 = vmatpush1.msra.mxu0 0.0
    %1401 = vmatprep.subr.mxu0 0.0
    %1402 = vmatpush1.msra.mxu0 0.0
    %1403 = vmatprep.subr.mxu0 0.0
    %1404 = vmatpush1.msra.mxu0 0.0
    %1405 = vmatprep.subr.mxu0 0.0
    %1406 = vmatpush1.msra.mxu0 0.0
    %1407 = vmatprep.subr.mxu0 0.0
    %1408 = vmatpush1.msra.mxu0 0.0
    %1409 = vmatprep.subr.mxu0 0.0
    %1410 = vmatpush1.msra.mxu0 0.0
    %1411 = vmatprep.subr.mxu0 0.0
    %1412 = vmatpush1.msra.mxu0 0.0
    %1413 = vmatprep.subr.mxu0 0.0
    %1414 = vmatpush1.msra.mxu0 0.0
    %1415 = vmatprep.subr.mxu0 0.0
    %1416 = vmatpush1.msra.mxu0 0.0
    %1417 = vmatprep.subr.mxu0 0.0
    %1418 = vmatpush1.msra.mxu0 0.0
    %1419 = vmatprep.subr.mxu0 0.0
    %1420 = vmatpush1.msra.mxu0 0.0
    %1421 = vmatprep.subr.mxu0 0.0
    %1422 = vmatpush1.msra.mxu0 0.0
    %1423 = vmatprep.subr.mxu0 0.0
    %1424 = vmatpush1.msra.mxu0 0.0
    %1425 = vmatprep.subr.mxu0 0.0
    %1426 = vmatpush1.msra.mxu0 0.0
    %1427 = vmatprep.mubr.f32.mxu0 0.0
    %1428 = vmatmul.mubr.f32.gmra.mrb[0].mxu0 %v1277
    %v1429 = vpop.f32.mrb[0].mxu0
    %v1430 = vadd.f32 0.0, %v1429
    %v1431 = vpop.f32.mrb[0].mxu0
    %1432 = vmatprep.mubr.f32.mxu0 0.0
    %1433 = vmatmul.mubr.f32.gmra.mrb[0].mxu0 %v1280
    %v1434 = vpop.f32.mrb[0].mxu0
    %v1435 = vadd.f32 0.0, %v1434
    %v1436 = vpop.f32.mrb[0].mxu0
    %1437 = vdwg.mxu0
    %v1438 = vld [vmem:[%s224] sm:$0xff]
    %v1439 = vld [vmem:[%s224 + $0x8] sm:$0xff]
    %v1441 = vsel %vm53, %v1438, 0
    %v1444 = vsel %vm53, %v1439, 0
    %1446 = vmatprep.subr.mxu0 0.0
    %1447 = vmatpush1.msra.mxu0 %v1430
    %1448 = vmatprep.subr.mxu0 0.0
    %1449 = vmatpush1.msra.mxu0 %v1435
    %1450 = vmatprep.subr.mxu0 0.0
    %1451 = vmatpush1.msra.mxu0 0.0
    %1452 = vmatprep.subr.mxu0 0.0
    %1453 = vmatpush1.msra.mxu0 0.0
    %1454 = vmatprep.subr.mxu0 0.0
    %1455 = vmatpush1.msra.mxu0 0.0
    %1456 = vmatprep.subr.mxu0 0.0
    %1457 = vmatpush1.msra.mxu0 0.0
    %1458 = vmatprep.subr.mxu0 0.0
    %1459 = vmatpush1.msra.mxu0 0.0
    %1460 = vmatprep.subr.mxu0 0.0
    %1461 = vmatpush1.msra.mxu0 0.0
    %1462 = vmatprep.subr.mxu0 0.0
    %1463 = vmatpush1.msra.mxu0 0.0
    %1464 = vmatprep.subr.mxu0 0.0
    %1465 = vmatpush1.msra.mxu0 0.0
    %1466 = vmatprep.subr.mxu0 0.0
    %1467 = vmatpush1.msra.mxu0 0.0
    %1468 = vmatprep.subr.mxu0 0.0
    %1469 = vmatpush1.msra.mxu0 0.0
    %1470 = vmatprep.subr.mxu0 0.0
    %1471 = vmatpush1.msra.mxu0 0.0
    %1472 = vmatprep.subr.mxu0 0.0
    %1473 = vmatpush1.msra.mxu0 0.0
    %1474 = vmatprep.subr.mxu0 0.0
    %1475 = vmatpush1.msra.mxu0 0.0
    %1476 = vmatprep.subr.mxu0 0.0
    %1477 = vmatpush1.msra.mxu0 0.0
    %1478 = vmatprep.subr.mxu0 0.0
    %1479 = vmatpush1.msra.mxu0 0.0
    %1480 = vmatprep.subr.mxu0 0.0
    %1481 = vmatpush1.msra.mxu0 0.0
    %1482 = vmatprep.subr.mxu0 0.0
    %1483 = vmatpush1.msra.mxu0 0.0
    %1484 = vmatprep.subr.mxu0 0.0
    %1485 = vmatpush1.msra.mxu0 0.0
    %1486 = vmatprep.subr.mxu0 0.0
    %1487 = vmatpush1.msra.mxu0 0.0
    %1488 = vmatprep.subr.mxu0 0.0
    %1489 = vmatpush1.msra.mxu0 0.0
    %1490 = vmatprep.subr.mxu0 0.0
    %1491 = vmatpush1.msra.mxu0 0.0
    %1492 = vmatprep.subr.mxu0 0.0
    %1493 = vmatpush1.msra.mxu0 0.0
    %1494 = vmatprep.subr.mxu0 0.0
    %1495 = vmatpush1.msra.mxu0 0.0
    %1496 = vmatprep.subr.mxu0 0.0
    %1497 = vmatpush1.msra.mxu0 0.0
    %1498 = vmatprep.subr.mxu0 0.0
    %1499 = vmatpush1.msra.mxu0 0.0
    %1500 = vmatprep.subr.mxu0 0.0
    %1501 = vmatpush1.msra.mxu0 0.0
    %1502 = vmatprep.subr.mxu0 0.0
    %1503 = vmatpush1.msra.mxu0 0.0
    %1504 = vmatprep.subr.mxu0 0.0
    %1505 = vmatpush1.msra.mxu0 0.0
    %1506 = vmatprep.subr.mxu0 0.0
    %1507 = vmatpush1.msra.mxu0 0.0
    %1508 = vmatprep.subr.mxu0 0.0
    %1509 = vmatpush1.msra.mxu0 0.0
    %1510 = vmatprep.mubr.f32.mxu0 0.0
    %1511 = vmatmul.mubr.f32.gmra.mrb[0].mxu0 %v1441
    %v1512 = vpop.f32.mrb[0].mxu0
    %v1513 = vadd.f32 0.0, %v1512
    %v1514 = vpop.f32.mrb[0].mxu0
    %1515 = vmatprep.mubr.f32.mxu0 0.0
    %1516 = vmatmul.mubr.f32.gmra.mrb[0].mxu0 %v1444
    %v1517 = vpop.f32.mrb[0].mxu0
    %v1518 = vadd.f32 0.0, %v1517
    %v1519 = vpop.f32.mrb[0].mxu0
    %1520 = vdwg.mxu0
    %v1522 = vsel %vm53, %v1357, 0
    %v1525 = vsel %vm53, %v1358, 0
    %1527 = vmatprep.subr.mxu0 0.0
    %1528 = vmatpush1.msra.mxu0 %v1349
    %1529 = vmatprep.subr.mxu0 0.0
    %1530 = vmatpush1.msra.mxu0 %v1354
    %1531 = vmatprep.subr.mxu0 0.0
    %1532 = vmatpush1.msra.mxu0 0.0
    %1533 = vmatprep.subr.mxu0 0.0
    %1534 = vmatpush1.msra.mxu0 0.0
    %1535 = vmatprep.subr.mxu0 0.0
    %1536 = vmatpush1.msra.mxu0 0.0
    %1537 = vmatprep.subr.mxu0 0.0
    %1538 = vmatpush1.msra.mxu0 0.0
    %1539 = vmatprep.subr.mxu0 0.0
    %1540 = vmatpush1.msra.mxu0 0.0
    %1541 = vmatprep.subr.mxu0 0.0
    %1542 = vmatpush1.msra.mxu0 0.0
    %1543 = vmatprep.subr.mxu0 0.0
    %1544 = vmatpush1.msra.mxu0 0.0
    %1545 = vmatprep.subr.mxu0 0.0
    %1546 = vmatpush1.msra.mxu0 0.0
    %1547 = vmatprep.subr.mxu0 0.0
    %1548 = vmatpush1.msra.mxu0 0.0
    %1549 = vmatprep.subr.mxu0 0.0
    %1550 = vmatpush1.msra.mxu0 0.0
    %1551 = vmatprep.subr.mxu0 0.0
    %1552 = vmatpush1.msra.mxu0 0.0
    %1553 = vmatprep.subr.mxu0 0.0
    %1554 = vmatpush1.msra.mxu0 0.0
    %1555 = vmatprep.subr.mxu0 0.0
    %1556 = vmatpush1.msra.mxu0 0.0
    %1557 = vmatprep.subr.mxu0 0.0
    %1558 = vmatpush1.msra.mxu0 0.0
    %1559 = vmatprep.subr.mxu0 0.0
    %1560 = vmatpush1.msra.mxu0 0.0
    %1561 = vmatprep.subr.mxu0 0.0
    %1562 = vmatpush1.msra.mxu0 0.0
    %1563 = vmatprep.subr.mxu0 0.0
    %1564 = vmatpush1.msra.mxu0 0.0
    %1565 = vmatprep.subr.mxu0 0.0
    %1566 = vmatpush1.msra.mxu0 0.0
    %1567 = vmatprep.subr.mxu0 0.0
    %1568 = vmatpush1.msra.mxu0 0.0
    %1569 = vmatprep.subr.mxu0 0.0
    %1570 = vmatpush1.msra.mxu0 0.0
    %1571 = vmatprep.subr.mxu0 0.0
    %1572 = vmatpush1.msra.mxu0 0.0
    %1573 = vmatprep.subr.mxu0 0.0
    %1574 = vmatpush1.msra.mxu0 0.0
    %1575 = vmatprep.subr.mxu0 0.0
    %1576 = vmatpush1.msra.mxu0 0.0
    %1577 = vmatprep.subr.mxu0 0.0
    %1578 = vmatpush1.msra.mxu0 0.0
    %1579 = vmatprep.subr.mxu0 0.0
    %1580 = vmatpush1.msra.mxu0 0.0
    %1581 = vmatprep.subr.mxu0 0.0
    %1582 = vmatpush1.msra.mxu0 0.0
    %1583 = vmatprep.subr.mxu0 0.0
    %1584 = vmatpush1.msra.mxu0 0.0
    %1585 = vmatprep.subr.mxu0 0.0
    %1586 = vmatpush1.msra.mxu0 0.0
    %1587 = vmatprep.subr.mxu0 0.0
    %1588 = vmatpush1.msra.mxu0 0.0
    %1589 = vmatprep.subr.mxu0 0.0
    %1590 = vmatpush1.msra.mxu0 0.0
    %1591 = vmatprep.mubr.f32.mxu0 0.0
    %1592 = vmatmul.mubr.f32.gmra.mrb[0].mxu0 %v1522
    %v1593 = vpop.f32.mrb[0].mxu0
    %v1594 = vadd.f32 %v1513, %v1593
    %v1595 = vpop.f32.mrb[0].mxu0
    %1596 = vmatprep.mubr.f32.mxu0 0.0
    %1597 = vmatmul.mubr.f32.gmra.mrb[0].mxu0 %v1525
    %v1598 = vpop.f32.mrb[0].mxu0
    %v1599 = vadd.f32 %v1518, %v1598
    %v1600 = vpop.f32.mrb[0].mxu0
    %1601 = vdwg.mxu0
    %v1602 = vld [vmem:[%s389] sm:$0xff]
    %v1603 = vld [vmem:[%s389 + $0x8] sm:$0xff]
    %v1604 = vld [vmem:[%s389 + $0x10] sm:$0xff]
    %v1605 = vld [vmem:[%s389 + $0x18] sm:$0xff]
    %1606 = vmatprep.subr.mxu0 0.0
    %1607 = vmatpush1.msra.mxu0 %v1602
    %1608 = vmatprep.subr.mxu0 0.0
    %1609 = vmatpush1.msra.mxu0 %v1603
    %1610 = vmatprep.subr.mxu0 0.0
    %1611 = vmatpush1.msra.mxu0 %v1604
    %1612 = vmatprep.subr.mxu0 0.0
    %1613 = vmatpush1.msra.mxu0 %v1605
    %1614 = vmatprep.subr.mxu0 0.0
    %1615 = vmatpush1.msra.mxu0 0.0
    %1616 = vmatprep.subr.mxu0 0.0
    %1617 = vmatpush1.msra.mxu0 0.0
    %1618 = vmatprep.subr.mxu0 0.0
    %1619 = vmatpush1.msra.mxu0 0.0
    %1620 = vmatprep.subr.mxu0 0.0
    %1621 = vmatpush1.msra.mxu0 0.0
    %1622 = vmatprep.subr.mxu0 0.0
    %1623 = vmatpush1.msra.mxu0 0.0
    %1624 = vmatprep.subr.mxu0 0.0
    %1625 = vmatpush1.msra.mxu0 0.0
    %1626 = vmatprep.subr.mxu0 0.0
    %1627 = vmatpush1.msra.mxu0 0.0
    %1628 = vmatprep.subr.mxu0 0.0
    %1629 = vmatpush1.msra.mxu0 0.0
    %1630 = vmatprep.subr.mxu0 0.0
    %1631 = vmatpush1.msra.mxu0 0.0
    %1632 = vmatprep.subr.mxu0 0.0
    %1633 = vmatpush1.msra.mxu0 0.0
    %1634 = vmatprep.subr.mxu0 0.0
    %1635 = vmatpush1.msra.mxu0 0.0
    %1636 = vmatprep.subr.mxu0 0.0
    %1637 = vmatpush1.msra.mxu0 0.0
    %1638 = vmatprep.subr.mxu0 0.0
    %1639 = vmatpush1.msra.mxu0 0.0
    %1640 = vmatprep.subr.mxu0 0.0
    %1641 = vmatpush1.msra.mxu0 0.0
    %1642 = vmatprep.subr.mxu0 0.0
    %1643 = vmatpush1.msra.mxu0 0.0
    %1644 = vmatprep.subr.mxu0 0.0
    %1645 = vmatpush1.msra.mxu0 0.0
    %1646 = vmatprep.subr.mxu0 0.0
    %1647 = vmatpush1.msra.mxu0 0.0
    %1648 = vmatprep.subr.mxu0 0.0
    %1649 = vmatpush1.msra.mxu0 0.0
    %1650 = vmatprep.subr.mxu0 0.0
    %1651 = vmatpush1.msra.mxu0 0.0
    %1652 = vmatprep.subr.mxu0 0.0
    %1653 = vmatpush1.msra.mxu0 0.0
    %1654 = vmatprep.subr.mxu0 0.0
    %1655 = vmatpush1.msra.mxu0 0.0
    %1656 = vmatprep.subr.mxu0 0.0
    %1657 = vmatpush1.msra.mxu0 0.0
    %1658 = vmatprep.subr.mxu0 0.0
    %1659 = vmatpush1.msra.mxu0 0.0
    %1660 = vmatprep.subr.mxu0 0.0
    %1661 = vmatpush1.msra.mxu0 0.0
    %1662 = vmatprep.subr.mxu0 0.0
    %1663 = vmatpush1.msra.mxu0 0.0
    %1664 = vmatprep.subr.mxu0 0.0
    %1665 = vmatpush1.msra.mxu0 0.0
    %1666 = vmatprep.subr.mxu0 0.0
    %1667 = vmatpush1.msra.mxu0 0.0
    %1668 = vmatprep.subr.mxu0 0.0
    %1669 = vmatpush1.msra.mxu0 0.0
    %1670 = vmatprep.mubr.f32.mxu0 0.0
    %1671 = vmatmul.mubr.f32.gmra.mrb[0].mxu0 %v1277
    %v1672 = vpop.f32.mrb[0].mxu0
    %v1673 = vadd.f32 0.0, %v1672
    %v1674 = vpop.f32.mrb[0].mxu0
    %1675 = vmatprep.mubr.f32.mxu0 0.0
    %1676 = vmatmul.mubr.f32.gmra.mrb[0].mxu0 %v1280
    %v1677 = vpop.f32.mrb[0].mxu0
    %v1678 = vadd.f32 0.0, %v1677
    %v1679 = vpop.f32.mrb[0].mxu0
    %1680 = vdwg.mxu0
    %v1681 = vld [vmem:[%s469] sm:$0xff]
    %v1682 = vld [vmem:[%s469 + $0x8] sm:$0xff]
    %v1684 = vsel %vm53, %v1681, 0
    %v1687 = vsel %vm53, %v1682, 0
    %1689 = vmatprep.subr.mxu0 0.0
    %1690 = vmatpush1.msra.mxu0 %v1673
    %1691 = vmatprep.subr.mxu0 0.0
    %1692 = vmatpush1.msra.mxu0 %v1678
    %1693 = vmatprep.subr.mxu0 0.0
    %1694 = vmatpush1.msra.mxu0 0.0
    %1695 = vmatprep.subr.mxu0 0.0
    %1696 = vmatpush1.msra.mxu0 0.0
    %1697 = vmatprep.subr.mxu0 0.0
    %1698 = vmatpush1.msra.mxu0 0.0
    %1699 = vmatprep.subr.mxu0 0.0
    %1700 = vmatpush1.msra.mxu0 0.0
    %1701 = vmatprep.subr.mxu0 0.0
    %1702 = vmatpush1.msra.mxu0 0.0
    %1703 = vmatprep.subr.mxu0 0.0
    %1704 = vmatpush1.msra.mxu0 0.0
    %1705 = vmatprep.subr.mxu0 0.0
    %1706 = vmatpush1.msra.mxu0 0.0
    %1707 = vmatprep.subr.mxu0 0.0
    %1708 = vmatpush1.msra.mxu0 0.0
    %1709 = vmatprep.subr.mxu0 0.0
    %1710 = vmatpush1.msra.mxu0 0.0
    %1711 = vmatprep.subr.mxu0 0.0
    %1712 = vmatpush1.msra.mxu0 0.0
    %1713 = vmatprep.subr.mxu0 0.0
    %1714 = vmatpush1.msra.mxu0 0.0
    %1715 = vmatprep.subr.mxu0 0.0
    %1716 = vmatpush1.msra.mxu0 0.0
    %1717 = vmatprep.subr.mxu0 0.0
    %1718 = vmatpush1.msra.mxu0 0.0
    %1719 = vmatprep.subr.mxu0 0.0
    %1720 = vmatpush1.msra.mxu0 0.0
    %1721 = vmatprep.subr.mxu0 0.0
    %1722 = vmatpush1.msra.mxu0 0.0
    %1723 = vmatprep.subr.mxu0 0.0
    %1724 = vmatpush1.msra.mxu0 0.0
    %1725 = vmatprep.subr.mxu0 0.0
    %1726 = vmatpush1.msra.mxu0 0.0
    %1727 = vmatprep.subr.mxu0 0.0
    %1728 = vmatpush1.msra.mxu0 0.0
    %1729 = vmatprep.subr.mxu0 0.0
    %1730 = vmatpush1.msra.mxu0 0.0
    %1731 = vmatprep.subr.mxu0 0.0
    %1732 = vmatpush1.msra.mxu0 0.0
    %1733 = vmatprep.subr.mxu0 0.0
    %1734 = vmatpush1.msra.mxu0 0.0
    %1735 = vmatprep.subr.mxu0 0.0
    %1736 = vmatpush1.msra.mxu0 0.0
    %1737 = vmatprep.subr.mxu0 0.0
    %1738 = vmatpush1.msra.mxu0 0.0
    %1739 = vmatprep.subr.mxu0 0.0
    %1740 = vmatpush1.msra.mxu0 0.0
    %1741 = vmatprep.subr.mxu0 0.0
    %1742 = vmatpush1.msra.mxu0 0.0
    %1743 = vmatprep.subr.mxu0 0.0
    %1744 = vmatpush1.msra.mxu0 0.0
    %1745 = vmatprep.subr.mxu0 0.0
    %1746 = vmatpush1.msra.mxu0 0.0
    %1747 = vmatprep.subr.mxu0 0.0
    %1748 = vmatpush1.msra.mxu0 0.0
    %1749 = vmatprep.subr.mxu0 0.0
    %1750 = vmatpush1.msra.mxu0 0.0
    %1751 = vmatprep.subr.mxu0 0.0
    %1752 = vmatpush1.msra.mxu0 0.0
    %1753 = vmatprep.mubr.f32.mxu0 0.0
    %1754 = vmatmul.mubr.f32.gmra.mrb[0].mxu0 %v1684
    %v1755 = vpop.f32.mrb[0].mxu0
    %v1756 = vadd.f32 0.0, %v1755
    %v1757 = vpop.f32.mrb[0].mxu0
    %1758 = vmatprep.mubr.f32.mxu0 0.0
    %1759 = vmatmul.mubr.f32.gmra.mrb[0].mxu0 %v1687
    %v1760 = vpop.f32.mrb[0].mxu0
    %v1761 = vadd.f32 0.0, %v1760
    %v1762 = vpop.f32.mrb[0].mxu0
    %1763 = vdwg.mxu0
    %v1764 = vadd.f32 %v1594, %v1756
    %v1765 = vadd.f32 %v1599, %v1761
    %v1766 = vld [vmem:[%s555] sm:$0xff]
    %v1767 = vld [vmem:[%s555 + $0x8] sm:$0xff]
    %v1768 = vld [vmem:[%s555 + $0x10] sm:$0xff]
    %v1769 = vld [vmem:[%s555 + $0x18] sm:$0xff]
    %1770 = vmatprep.subr.mxu0 0.0
    %1771 = vmatpush1.msra.mxu0 %v1766
    %1772 = vmatprep.subr.mxu0 0.0
    %1773 = vmatpush1.msra.mxu0 %v1767
    %1774 = vmatprep.subr.mxu0 0.0
    %1775 = vmatpush1.msra.mxu0 %v1768
    %1776 = vmatprep.subr.mxu0 0.0
    %1777 = vmatpush1.msra.mxu0 %v1769
    %1778 = vmatprep.subr.mxu0 0.0
    %1779 = vmatpush1.msra.mxu0 0.0
    %1780 = vmatprep.subr.mxu0 0.0
    %1781 = vmatpush1.msra.mxu0 0.0
    %1782 = vmatprep.subr.mxu0 0.0
    %1783 = vmatpush1.msra.mxu0 0.0
    %1784 = vmatprep.subr.mxu0 0.0
    %1785 = vmatpush1.msra.mxu0 0.0
    %1786 = vmatprep.subr.mxu0 0.0
    %1787 = vmatpush1.msra.mxu0 0.0
    %1788 = vmatprep.subr.mxu0 0.0
    %1789 = vmatpush1.msra.mxu0 0.0
    %1790 = vmatprep.subr.mxu0 0.0
    %1791 = vmatpush1.msra.mxu0 0.0
    %1792 = vmatprep.subr.mxu0 0.0
    %1793 = vmatpush1.msra.mxu0 0.0
    %1794 = vmatprep.subr.mxu0 0.0
    %1795 = vmatpush1.msra.mxu0 0.0
    %1796 = vmatprep.subr.mxu0 0.0
    %1797 = vmatpush1.msra.mxu0 0.0
    %1798 = vmatprep.subr.mxu0 0.0
    %1799 = vmatpush1.msra.mxu0 0.0
    %1800 = vmatprep.subr.mxu0 0.0
    %1801 = vmatpush1.msra.mxu0 0.0
    %1802 = vmatprep.subr.mxu0 0.0
    %1803 = vmatpush1.msra.mxu0 0.0
    %1804 = vmatprep.subr.mxu0 0.0
    %1805 = vmatpush1.msra.mxu0 0.0
    %1806 = vmatprep.subr.mxu0 0.0
    %1807 = vmatpush1.msra.mxu0 0.0
    %1808 = vmatprep.subr.mxu0 0.0
    %1809 = vmatpush1.msra.mxu0 0.0
    %1810 = vmatprep.subr.mxu0 0.0
    %1811 = vmatpush1.msra.mxu0 0.0
    %1812 = vmatprep.subr.mxu0 0.0
    %1813 = vmatpush1.msra.mxu0 0.0
    %1814 = vmatprep.subr.mxu0 0.0
    %1815 = vmatpush1.msra.mxu0 0.0
    %1816 = vmatprep.subr.mxu0 0.0
    %1817 = vmatpush1.msra.mxu0 0.0
    %1818 = vmatprep.subr.mxu0 0.0
    %1819 = vmatpush1.msra.mxu0 0.0
    %1820 = vmatprep.subr.mxu0 0.0
    %1821 = vmatpush1.msra.mxu0 0.0
    %1822 = vmatprep.subr.mxu0 0.0
    %1823 = vmatpush1.msra.mxu0 0.0
    %1824 = vmatprep.subr.mxu0 0.0
    %1825 = vmatpush1.msra.mxu0 0.0
    %1826 = vmatprep.subr.mxu0 0.0
    %1827 = vmatpush1.msra.mxu0 0.0
    %1828 = vmatprep.subr.mxu0 0.0
    %1829 = vmatpush1.msra.mxu0 0.0
    %1830 = vmatprep.subr.mxu0 0.0
    %1831 = vmatpush1.msra.mxu0 0.0
    %1832 = vmatprep.subr.mxu0 0.0
    %1833 = vmatpush1.msra.mxu0 0.0
    %1834 = vmatprep.mubr.f32.mxu0 0.0
    %1835 = vmatmul.mubr.f32.gmra.mrb[0].mxu0 %v1277
    %v1836 = vpop.f32.mrb[0].mxu0
    %v1837 = vadd.f32 0.0, %v1836
    %v1838 = vpop.f32.mrb[0].mxu0
    %1839 = vmatprep.mubr.f32.mxu0 0.0
    %1840 = vmatmul.mubr.f32.gmra.mrb[0].mxu0 %v1280
    %v1841 = vpop.f32.mrb[0].mxu0
    %v1842 = vadd.f32 0.0, %v1841
    %v1843 = vpop.f32.mrb[0].mxu0
    %1844 = vdwg.mxu0
    %v1845 = vld [vmem:[%s635] sm:$0xff]
    %v1846 = vld [vmem:[%s635 + $0x8] sm:$0xff]
    %v1848 = vsel %vm53, %v1845, 0
    %v1851 = vsel %vm53, %v1846, 0
    %1853 = vmatprep.subr.mxu0 0.0
    %1854 = vmatpush1.msra.mxu0 %v1837
    %1855 = vmatprep.subr.mxu0 0.0
    %1856 = vmatpush1.msra.mxu0 %v1842
    %1857 = vmatprep.subr.mxu0 0.0
    %1858 = vmatpush1.msra.mxu0 0.0
    %1859 = vmatprep.subr.mxu0 0.0
    %1860 = vmatpush1.msra.mxu0 0.0
    %1861 = vmatprep.subr.mxu0 0.0
    %1862 = vmatpush1.msra.mxu0 0.0
    %1863 = vmatprep.subr.mxu0 0.0
    %1864 = vmatpush1.msra.mxu0 0.0
    %1865 = vmatprep.subr.mxu0 0.0
    %1866 = vmatpush1.msra.mxu0 0.0
    %1867 = vmatprep.subr.mxu0 0.0
    %1868 = vmatpush1.msra.mxu0 0.0
    %1869 = vmatprep.subr.mxu0 0.0
    %1870 = vmatpush1.msra.mxu0 0.0
    %1871 = vmatprep.subr.mxu0 0.0
    %1872 = vmatpush1.msra.mxu0 0.0
    %1873 = vmatprep.subr.mxu0 0.0
    %1874 = vmatpush1.msra.mxu0 0.0
    %1875 = vmatprep.subr.mxu0 0.0
    %1876 = vmatpush1.msra.mxu0 0.0
    %1877 = vmatprep.subr.mxu0 0.0
    %1878 = vmatpush1.msra.mxu0 0.0
    %1879 = vmatprep.subr.mxu0 0.0
    %1880 = vmatpush1.msra.mxu0 0.0
    %1881 = vmatprep.subr.mxu0 0.0
    %1882 = vmatpush1.msra.mxu0 0.0
    %1883 = vmatprep.subr.mxu0 0.0
    %1884 = vmatpush1.msra.mxu0 0.0
    %1885 = vmatprep.subr.mxu0 0.0
    %1886 = vmatpush1.msra.mxu0 0.0
    %1887 = vmatprep.subr.mxu0 0.0
    %1888 = vmatpush1.msra.mxu0 0.0
    %1889 = vmatprep.subr.mxu0 0.0
    %1890 = vmatpush1.msra.mxu0 0.0
    %1891 = vmatprep.subr.mxu0 0.0
    %1892 = vmatpush1.msra.mxu0 0.0
    %1893 = vmatprep.subr.mxu0 0.0
    %1894 = vmatpush1.msra.mxu0 0.0
    %1895 = vmatprep.subr.mxu0 0.0
    %1896 = vmatpush1.msra.mxu0 0.0
    %1897 = vmatprep.subr.mxu0 0.0
    %1898 = vmatpush1.msra.mxu0 0.0
    %1899 = vmatprep.subr.mxu0 0.0
    %1900 = vmatpush1.msra.mxu0 0.0
    %1901 = vmatprep.subr.mxu0 0.0
    %1902 = vmatpush1.msra.mxu0 0.0
    %1903 = vmatprep.subr.mxu0 0.0
    %1904 = vmatpush1.msra.mxu0 0.0
    %1905 = vmatprep.subr.mxu0 0.0
    %1906 = vmatpush1.msra.mxu0 0.0
    %1907 = vmatprep.subr.mxu0 0.0
    %1908 = vmatpush1.msra.mxu0 0.0
    %1909 = vmatprep.subr.mxu0 0.0
    %1910 = vmatpush1.msra.mxu0 0.0
    %1911 = vmatprep.subr.mxu0 0.0
    %1912 = vmatpush1.msra.mxu0 0.0
    %1913 = vmatprep.subr.mxu0 0.0
    %1914 = vmatpush1.msra.mxu0 0.0
    %1915 = vmatprep.subr.mxu0 0.0
    %1916 = vmatpush1.msra.mxu0 0.0
    %1917 = vmatprep.mubr.f32.mxu0 0.0
    %1918 = vmatmul.mubr.f32.gmra.mrb[0].mxu0 %v1848
    %v1919 = vpop.f32.mrb[0].mxu0
    %v1920 = vadd.f32 0.0, %v1919
    %v1921 = vpop.f32.mrb[0].mxu0
    %1922 = vmatprep.mubr.f32.mxu0 0.0
    %1923 = vmatmul.mubr.f32.gmra.mrb[0].mxu0 %v1851
    %v1924 = vpop.f32.mrb[0].mxu0
    %v1925 = vadd.f32 0.0, %v1924
    %v1926 = vpop.f32.mrb[0].mxu0
    %1927 = vdwg.mxu0
    %v1928 = vadd.f32 %v1764, %v1920
    %v1929 = vadd.f32 %v1765, %v1925
    %v1930 = vld [vmem:[%s721] sm:$0xff]
    %v1931 = vld [vmem:[%s721 + $0x8] sm:$0xff]
    %v1932 = vld [vmem:[%s721 + $0x10] sm:$0xff]
    %v1933 = vld [vmem:[%s721 + $0x18] sm:$0xff]
    %1934 = vmatprep.subr.mxu0 0.0
    %1935 = vmatpush1.msra.mxu0 %v1930
    %1936 = vmatprep.subr.mxu0 0.0
    %1937 = vmatpush1.msra.mxu0 %v1931
    %1938 = vmatprep.subr.mxu0 0.0
    %1939 = vmatpush1.msra.mxu0 %v1932
    %1940 = vmatprep.subr.mxu0 0.0
    %1941 = vmatpush1.msra.mxu0 %v1933
    %1942 = vmatprep.subr.mxu0 0.0
    %1943 = vmatpush1.msra.mxu0 0.0
    %1944 = vmatprep.subr.mxu0 0.0
    %1945 = vmatpush1.msra.mxu0 0.0
    %1946 = vmatprep.subr.mxu0 0.0
    %1947 = vmatpush1.msra.mxu0 0.0
    %1948 = vmatprep.subr.mxu0 0.0
    %1949 = vmatpush1.msra.mxu0 0.0
    %1950 = vmatprep.subr.mxu0 0.0
    %1951 = vmatpush1.msra.mxu0 0.0
    %1952 = vmatprep.subr.mxu0 0.0
    %1953 = vmatpush1.msra.mxu0 0.0
    %1954 = vmatprep.subr.mxu0 0.0
    %1955 = vmatpush1.msra.mxu0 0.0
    %1956 = vmatprep.subr.mxu0 0.0
    %1957 = vmatpush1.msra.mxu0 0.0
    %1958 = vmatprep.subr.mxu0 0.0
    %1959 = vmatpush1.msra.mxu0 0.0
    %1960 = vmatprep.subr.mxu0 0.0
    %1961 = vmatpush1.msra.mxu0 0.0
    %1962 = vmatprep.subr.mxu0 0.0
    %1963 = vmatpush1.msra.mxu0 0.0
    %1964 = vmatprep.subr.mxu0 0.0
    %1965 = vmatpush1.msra.mxu0 0.0
    %1966 = vmatprep.subr.mxu0 0.0
    %1967 = vmatpush1.msra.mxu0 0.0
    %1968 = vmatprep.subr.mxu0 0.0
    %1969 = vmatpush1.msra.mxu0 0.0
    %1970 = vmatprep.subr.mxu0 0.0
    %1971 = vmatpush1.msra.mxu0 0.0
    %1972 = vmatprep.subr.mxu0 0.0
    %1973 = vmatpush1.msra.mxu0 0.0
    %1974 = vmatprep.subr.mxu0 0.0
    %1975 = vmatpush1.msra.mxu0 0.0
    %1976 = vmatprep.subr.mxu0 0.0
    %1977 = vmatpush1.msra.mxu0 0.0
    %1978 = vmatprep.subr.mxu0 0.0
    %1979 = vmatpush1.msra.mxu0 0.0
    %1980 = vmatprep.subr.mxu0 0.0
    %1981 = vmatpush1.msra.mxu0 0.0
    %1982 = vmatprep.subr.mxu0 0.0
    %1983 = vmatpush1.msra.mxu0 0.0
    %1984 = vmatprep.subr.mxu0 0.0
    %1985 = vmatpush1.msra.mxu0 0.0
    %1986 = vmatprep.subr.mxu0 0.0
    %1987 = vmatpush1.msra.mxu0 0.0
    %1988 = vmatprep.subr.mxu0 0.0
    %1989 = vmatpush1.msra.mxu0 0.0
    %1990 = vmatprep.subr.mxu0 0.0
    %1991 = vmatpush1.msra.mxu0 0.0
    %1992 = vmatprep.subr.mxu0 0.0
    %1993 = vmatpush1.msra.mxu0 0.0
    %1994 = vmatprep.subr.mxu0 0.0
    %1995 = vmatpush1.msra.mxu0 0.0
    %1996 = vmatprep.subr.mxu0 0.0
    %1997 = vmatpush1.msra.mxu0 0.0
    %1998 = vmatprep.mubr.f32.mxu0 0.0
    %1999 = vmatmul.mubr.f32.gmra.mrb[0].mxu0 %v1277
    %v2000 = vpop.f32.mrb[0].mxu0
    %v2001 = vadd.f32 0.0, %v2000
    %v2002 = vpop.f32.mrb[0].mxu0
    %2003 = vmatprep.mubr.f32.mxu0 0.0
    %2004 = vmatmul.mubr.f32.gmra.mrb[0].mxu0 %v1280
    %v2005 = vpop.f32.mrb[0].mxu0
    %v2006 = vadd.f32 0.0, %v2005
    %v2007 = vpop.f32.mrb[0].mxu0
    %2008 = vdwg.mxu0
    %v2009 = vld [vmem:[%s801] sm:$0xff]
    %v2010 = vld [vmem:[%s801 + $0x8] sm:$0xff]
    %v2012 = vsel %vm53, %v2009, 0
    %v2015 = vsel %vm53, %v2010, 0
    %2017 = vmatprep.subr.mxu0 0.0
    %2018 = vmatpush1.msra.mxu0 %v2001
    %2019 = vmatprep.subr.mxu0 0.0
    %2020 = vmatpush1.msra.mxu0 %v2006
    %2021 = vmatprep.subr.mxu0 0.0
    %2022 = vmatpush1.msra.mxu0 0.0
    %2023 = vmatprep.subr.mxu0 0.0
    %2024 = vmatpush1.msra.mxu0 0.0
    %2025 = vmatprep.subr.mxu0 0.0
    %2026 = vmatpush1.msra.mxu0 0.0
    %2027 = vmatprep.subr.mxu0 0.0
    %2028 = vmatpush1.msra.mxu0 0.0
    %2029 = vmatprep.subr.mxu0 0.0
    %2030 = vmatpush1.msra.mxu0 0.0
    %2031 = vmatprep.subr.mxu0 0.0
    %2032 = vmatpush1.msra.mxu0 0.0
    %2033 = vmatprep.subr.mxu0 0.0
    %2034 = vmatpush1.msra.mxu0 0.0
    %2035 = vmatprep.subr.mxu0 0.0
    %2036 = vmatpush1.msra.mxu0 0.0
    %2037 = vmatprep.subr.mxu0 0.0
    %2038 = vmatpush1.msra.mxu0 0.0
    %2039 = vmatprep.subr.mxu0 0.0
    %2040 = vmatpush1.msra.mxu0 0.0
    %2041 = vmatprep.subr.mxu0 0.0
    %2042 = vmatpush1.msra.mxu0 0.0
    %2043 = vmatprep.subr.mxu0 0.0
    %2044 = vmatpush1.msra.mxu0 0.0
    %2045 = vmatprep.subr.mxu0 0.0
    %2046 = vmatpush1.msra.mxu0 0.0
    %2047 = vmatprep.subr.mxu0 0.0
    %2048 = vmatpush1.msra.mxu0 0.0
    %2049 = vmatprep.subr.mxu0 0.0
    %2050 = vmatpush1.msra.mxu0 0.0
    %2051 = vmatprep.subr.mxu0 0.0
    %2052 = vmatpush1.msra.mxu0 0.0
    %2053 = vmatprep.subr.mxu0 0.0
    %2054 = vmatpush1.msra.mxu0 0.0
    %2055 = vmatprep.subr.mxu0 0.0
    %2056 = vmatpush1.msra.mxu0 0.0
    %2057 = vmatprep.subr.mxu0 0.0
    %2058 = vmatpush1.msra.mxu0 0.0
    %2059 = vmatprep.subr.mxu0 0.0
    %2060 = vmatpush1.msra.mxu0 0.0
    %2061 = vmatprep.subr.mxu0 0.0
    %2062 = vmatpush1.msra.mxu0 0.0
    %2063 = vmatprep.subr.mxu0 0.0
    %2064 = vmatpush1.msra.mxu0 0.0
    %2065 = vmatprep.subr.mxu0 0.0
    %2066 = vmatpush1.msra.mxu0 0.0
    %2067 = vmatprep.subr.mxu0 0.0
    %2068 = vmatpush1.msra.mxu0 0.0
    %2069 = vmatprep.subr.mxu0 0.0
    %2070 = vmatpush1.msra.mxu0 0.0
    %2071 = vmatprep.subr.mxu0 0.0
    %2072 = vmatpush1.msra.mxu0 0.0
    %2073 = vmatprep.subr.mxu0 0.0
    %2074 = vmatpush1.msra.mxu0 0.0
    %2075 = vmatprep.subr.mxu0 0.0
    %2076 = vmatpush1.msra.mxu0 0.0
    %2077 = vmatprep.subr.mxu0 0.0
    %2078 = vmatpush1.msra.mxu0 0.0
    %2079 = vmatprep.subr.mxu0 0.0
    %2080 = vmatpush1.msra.mxu0 0.0
    %2081 = vmatprep.mubr.f32.mxu0 0.0
    %2082 = vmatmul.mubr.f32.gmra.mrb[0].mxu0 %v2012
    %v2083 = vpop.f32.mrb[0].mxu0
    %v2084 = vadd.f32 0.0, %v2083
    %v2085 = vpop.f32.mrb[0].mxu0
    %2086 = vmatprep.mubr.f32.mxu0 0.0
    %2087 = vmatmul.mubr.f32.gmra.mrb[0].mxu0 %v2015
    %v2088 = vpop.f32.mrb[0].mxu0
    %v2089 = vadd.f32 0.0, %v2088
    %v2090 = vpop.f32.mrb[0].mxu0
    %2091 = vdwg.mxu0
    %v2092 = vadd.f32 %v1928, %v2084
    %v2093 = vadd.f32 %v1929, %v2089
    %v2094 = vld [vmem:[%s887] sm:$0xff]
    %v2095 = vld [vmem:[%s887 + $0x8] sm:$0xff]
    %v2096 = vld [vmem:[%s887 + $0x10] sm:$0xff]
    %v2097 = vld [vmem:[%s887 + $0x18] sm:$0xff]
    %2098 = vmatprep.subr.mxu0 0.0
    %2099 = vmatpush1.msra.mxu0 %v2094
    %2100 = vmatprep.subr.mxu0 0.0
    %2101 = vmatpush1.msra.mxu0 %v2095
    %2102 = vmatprep.subr.mxu0 0.0
    %2103 = vmatpush1.msra.mxu0 %v2096
    %2104 = vmatprep.subr.mxu0 0.0
    %2105 = vmatpush1.msra.mxu0 %v2097
    %2106 = vmatprep.subr.mxu0 0.0
    %2107 = vmatpush1.msra.mxu0 0.0
    %2108 = vmatprep.subr.mxu0 0.0
    %2109 = vmatpush1.msra.mxu0 0.0
    %2110 = vmatprep.subr.mxu0 0.0
    %2111 = vmatpush1.msra.mxu0 0.0
    %2112 = vmatprep.subr.mxu0 0.0
    %2113 = vmatpush1.msra.mxu0 0.0
    %2114 = vmatprep.subr.mxu0 0.0
    %2115 = vmatpush1.msra.mxu0 0.0
    %2116 = vmatprep.subr.mxu0 0.0
    %2117 = vmatpush1.msra.mxu0 0.0
    %2118 = vmatprep.subr.mxu0 0.0
    %2119 = vmatpush1.msra.mxu0 0.0
    %2120 = vmatprep.subr.mxu0 0.0
    %2121 = vmatpush1.msra.mxu0 0.0
    %2122 = vmatprep.subr.mxu0 0.0
    %2123 = vmatpush1.msra.mxu0 0.0
    %2124 = vmatprep.subr.mxu0 0.0
    %2125 = vmatpush1.msra.mxu0 0.0
    %2126 = vmatprep.subr.mxu0 0.0
    %2127 = vmatpush1.msra.mxu0 0.0
    %2128 = vmatprep.subr.mxu0 0.0
    %2129 = vmatpush1.msra.mxu0 0.0
    %2130 = vmatprep.subr.mxu0 0.0
    %2131 = vmatpush1.msra.mxu0 0.0
    %2132 = vmatprep.subr.mxu0 0.0
    %2133 = vmatpush1.msra.mxu0 0.0
    %2134 = vmatprep.subr.mxu0 0.0
    %2135 = vmatpush1.msra.mxu0 0.0
    %2136 = vmatprep.subr.mxu0 0.0
    %2137 = vmatpush1.msra.mxu0 0.0
    %2138 = vmatprep.subr.mxu0 0.0
    %2139 = vmatpush1.msra.mxu0 0.0
    %2140 = vmatprep.subr.mxu0 0.0
    %2141 = vmatpush1.msra.mxu0 0.0
    %2142 = vmatprep.subr.mxu0 0.0
    %2143 = vmatpush1.msra.mxu0 0.0
    %2144 = vmatprep.subr.mxu0 0.0
    %2145 = vmatpush1.msra.mxu0 0.0
    %2146 = vmatprep.subr.mxu0 0.0
    %2147 = vmatpush1.msra.mxu0 0.0
    %2148 = vmatprep.subr.mxu0 0.0
    %2149 = vmatpush1.msra.mxu0 0.0
    %2150 = vmatprep.subr.mxu0 0.0
    %2151 = vmatpush1.msra.mxu0 0.0
    %2152 = vmatprep.subr.mxu0 0.0
    %2153 = vmatpush1.msra.mxu0 0.0
    %2154 = vmatprep.subr.mxu0 0.0
    %2155 = vmatpush1.msra.mxu0 0.0
    %2156 = vmatprep.subr.mxu0 0.0
    %2157 = vmatpush1.msra.mxu0 0.0
    %2158 = vmatprep.subr.mxu0 0.0
    %2159 = vmatpush1.msra.mxu0 0.0
    %2160 = vmatprep.subr.mxu0 0.0
    %2161 = vmatpush1.msra.mxu0 0.0
    %2162 = vmatprep.mubr.f32.mxu0 0.0
    %2163 = vmatmul.mubr.f32.gmra.mrb[0].mxu0 %v1277
    %v2164 = vpop.f32.mrb[0].mxu0
    %v2165 = vadd.f32 0.0, %v2164
    %v2166 = vpop.f32.mrb[0].mxu0
    %2167 = vmatprep.mubr.f32.mxu0 0.0
    %2168 = vmatmul.mubr.f32.gmra.mrb[0].mxu0 %v1280
    %v2169 = vpop.f32.mrb[0].mxu0
    %v2170 = vadd.f32 0.0, %v2169
    %v2171 = vpop.f32.mrb[0].mxu0
    %2172 = vdwg.mxu0
    %v2173 = vld [vmem:[%s967] sm:$0xff]
    %v2174 = vld [vmem:[%s967 + $0x8] sm:$0xff]
    %v2176 = vsel %vm53, %v2173, 0
    %v2179 = vsel %vm53, %v2174, 0
    %2181 = vmatprep.subr.mxu0 0.0
    %2182 = vmatpush1.msra.mxu0 %v2165
    %2183 = vmatprep.subr.mxu0 0.0
    %2184 = vmatpush1.msra.mxu0 %v2170
    %2185 = vmatprep.subr.mxu0 0.0
    %2186 = vmatpush1.msra.mxu0 0.0
    %2187 = vmatprep.subr.mxu0 0.0
    %2188 = vmatpush1.msra.mxu0 0.0
    %2189 = vmatprep.subr.mxu0 0.0
    %2190 = vmatpush1.msra.mxu0 0.0
    %2191 = vmatprep.subr.mxu0 0.0
    %2192 = vmatpush1.msra.mxu0 0.0
    %2193 = vmatprep.subr.mxu0 0.0
    %2194 = vmatpush1.msra.mxu0 0.0
    %2195 = vmatprep.subr.mxu0 0.0
    %2196 = vmatpush1.msra.mxu0 0.0
    %2197 = vmatprep.subr.mxu0 0.0
    %2198 = vmatpush1.msra.mxu0 0.0
    %2199 = vmatprep.subr.mxu0 0.0
    %2200 = vmatpush1.msra.mxu0 0.0
    %2201 = vmatprep.subr.mxu0 0.0
    %2202 = vmatpush1.msra.mxu0 0.0
    %2203 = vmatprep.subr.mxu0 0.0
    %2204 = vmatpush1.msra.mxu0 0.0
    %2205 = vmatprep.subr.mxu0 0.0
    %2206 = vmatpush1.msra.mxu0 0.0
    %2207 = vmatprep.subr.mxu0 0.0
    %2208 = vmatpush1.msra.mxu0 0.0
    %2209 = vmatprep.subr.mxu0 0.0
    %2210 = vmatpush1.msra.mxu0 0.0
    %2211 = vmatprep.subr.mxu0 0.0
    %2212 = vmatpush1.msra.mxu0 0.0
    %2213 = vmatprep.subr.mxu0 0.0
    %2214 = vmatpush1.msra.mxu0 0.0
    %2215 = vmatprep.subr.mxu0 0.0
    %2216 = vmatpush1.msra.mxu0 0.0
    %2217 = vmatprep.subr.mxu0 0.0
    %2218 = vmatpush1.msra.mxu0 0.0
    %2219 = vmatprep.subr.mxu0 0.0
    %2220 = vmatpush1.msra.mxu0 0.0
    %2221 = vmatprep.subr.mxu0 0.0
    %2222 = vmatpush1.msra.mxu0 0.0
    %2223 = vmatprep.subr.mxu0 0.0
    %2224 = vmatpush1.msra.mxu0 0.0
    %2225 = vmatprep.subr.mxu0 0.0
    %2226 = vmatpush1.msra.mxu0 0.0
    %2227 = vmatprep.subr.mxu0 0.0
    %2228 = vmatpush1.msra.mxu0 0.0
    %2229 = vmatprep.subr.mxu0 0.0
    %2230 = vmatpush1.msra.mxu0 0.0
    %2231 = vmatprep.subr.mxu0 0.0
    %2232 = vmatpush1.msra.mxu0 0.0
    %2233 = vmatprep.subr.mxu0 0.0
    %2234 = vmatpush1.msra.mxu0 0.0
    %2235 = vmatprep.subr.mxu0 0.0
    %2236 = vmatpush1.msra.mxu0 0.0
    %2237 = vmatprep.subr.mxu0 0.0
    %2238 = vmatpush1.msra.mxu0 0.0
    %2239 = vmatprep.subr.mxu0 0.0
    %2240 = vmatpush1.msra.mxu0 0.0
    %2241 = vmatprep.subr.mxu0 0.0
    %2242 = vmatpush1.msra.mxu0 0.0
    %2243 = vmatprep.subr.mxu0 0.0
    %2244 = vmatpush1.msra.mxu0 0.0
    %2245 = vmatprep.mubr.f32.mxu0 0.0
    %2246 = vmatmul.mubr.f32.gmra.mrb[0].mxu0 %v2176
    %v2247 = vpop.f32.mrb[0].mxu0
    %v2248 = vadd.f32 0.0, %v2247
    %v2249 = vpop.f32.mrb[0].mxu0
    %2250 = vmatprep.mubr.f32.mxu0 0.0
    %2251 = vmatmul.mubr.f32.gmra.mrb[0].mxu0 %v2179
    %v2252 = vpop.f32.mrb[0].mxu0
    %v2253 = vadd.f32 0.0, %v2252
    %v2254 = vpop.f32.mrb[0].mxu0
    %2255 = vdwg.mxu0
    %v2256 = vadd.f32 %v2092, %v2248
    %v2257 = vadd.f32 %v2093, %v2253
    %v2258 = vld [vmem:[%s1053] sm:$0xff]
    %v2259 = vld [vmem:[%s1053 + $0x8] sm:$0xff]
    %v2260 = vld [vmem:[%s1053 + $0x10] sm:$0xff]
    %v2261 = vld [vmem:[%s1053 + $0x18] sm:$0xff]
    %2262 = vmatprep.subr.mxu0 0.0
    %2263 = vmatpush1.msra.mxu0 %v2258
    %2264 = vmatprep.subr.mxu0 0.0
    %2265 = vmatpush1.msra.mxu0 %v2259
    %2266 = vmatprep.subr.mxu0 0.0
    %2267 = vmatpush1.msra.mxu0 %v2260
    %2268 = vmatprep.subr.mxu0 0.0
    %2269 = vmatpush1.msra.mxu0 %v2261
    %2270 = vmatprep.subr.mxu0 0.0
    %2271 = vmatpush1.msra.mxu0 0.0
    %2272 = vmatprep.subr.mxu0 0.0
    %2273 = vmatpush1.msra.mxu0 0.0
    %2274 = vmatprep.subr.mxu0 0.0
    %2275 = vmatpush1.msra.mxu0 0.0
    %2276 = vmatprep.subr.mxu0 0.0
    %2277 = vmatpush1.msra.mxu0 0.0
    %2278 = vmatprep.subr.mxu0 0.0
    %2279 = vmatpush1.msra.mxu0 0.0
    %2280 = vmatprep.subr.mxu0 0.0
    %2281 = vmatpush1.msra.mxu0 0.0
    %2282 = vmatprep.subr.mxu0 0.0
    %2283 = vmatpush1.msra.mxu0 0.0
    %2284 = vmatprep.subr.mxu0 0.0
    %2285 = vmatpush1.msra.mxu0 0.0
    %2286 = vmatprep.subr.mxu0 0.0
    %2287 = vmatpush1.msra.mxu0 0.0
    %2288 = vmatprep.subr.mxu0 0.0
    %2289 = vmatpush1.msra.mxu0 0.0
    %2290 = vmatprep.subr.mxu0 0.0
    %2291 = vmatpush1.msra.mxu0 0.0
    %2292 = vmatprep.subr.mxu0 0.0
    %2293 = vmatpush1.msra.mxu0 0.0
    %2294 = vmatprep.subr.mxu0 0.0
    %2295 = vmatpush1.msra.mxu0 0.0
    %2296 = vmatprep.subr.mxu0 0.0
    %2297 = vmatpush1.msra.mxu0 0.0
    %2298 = vmatprep.subr.mxu0 0.0
    %2299 = vmatpush1.msra.mxu0 0.0
    %2300 = vmatprep.subr.mxu0 0.0
    %2301 = vmatpush1.msra.mxu0 0.0
    %2302 = vmatprep.subr.mxu0 0.0
    %2303 = vmatpush1.msra.mxu0 0.0
    %2304 = vmatprep.subr.mxu0 0.0
    %2305 = vmatpush1.msra.mxu0 0.0
    %2306 = vmatprep.subr.mxu0 0.0
    %2307 = vmatpush1.msra.mxu0 0.0
    %2308 = vmatprep.subr.mxu0 0.0
    %2309 = vmatpush1.msra.mxu0 0.0
    %2310 = vmatprep.subr.mxu0 0.0
    %2311 = vmatpush1.msra.mxu0 0.0
    %2312 = vmatprep.subr.mxu0 0.0
    %2313 = vmatpush1.msra.mxu0 0.0
    %2314 = vmatprep.subr.mxu0 0.0
    %2315 = vmatpush1.msra.mxu0 0.0
    %2316 = vmatprep.subr.mxu0 0.0
    %2317 = vmatpush1.msra.mxu0 0.0
    %2318 = vmatprep.subr.mxu0 0.0
    %2319 = vmatpush1.msra.mxu0 0.0
    %2320 = vmatprep.subr.mxu0 0.0
    %2321 = vmatpush1.msra.mxu0 0.0
    %2322 = vmatprep.subr.mxu0 0.0
    %2323 = vmatpush1.msra.mxu0 0.0
    %2324 = vmatprep.subr.mxu0 0.0
    %2325 = vmatpush1.msra.mxu0 0.0
    %2326 = vmatprep.mubr.f32.mxu0 0.0
    %2327 = vmatmul.mubr.f32.gmra.mrb[0].mxu0 %v1277
    %v2328 = vpop.f32.mrb[0].mxu0
    %v2329 = vadd.f32 0.0, %v2328
    %v2330 = vpop.f32.mrb[0].mxu0
    %2331 = vmatprep.mubr.f32.mxu0 0.0
    %2332 = vmatmul.mubr.f32.gmra.mrb[0].mxu0 %v1280
    %v2333 = vpop.f32.mrb[0].mxu0
    %v2334 = vadd.f32 0.0, %v2333
    %v2335 = vpop.f32.mrb[0].mxu0
    %2336 = vdwg.mxu0
    %v2337 = vld [vmem:[%s1133] sm:$0xff]
    %v2338 = vld [vmem:[%s1133 + $0x8] sm:$0xff]
    %v2340 = vsel %vm53, %v2337, 0
    %v2343 = vsel %vm53, %v2338, 0
    %2345 = vmatprep.subr.mxu0 0.0
    %2346 = vmatpush1.msra.mxu0 %v2329
    %2347 = vmatprep.subr.mxu0 0.0
    %2348 = vmatpush1.msra.mxu0 %v2334
    %2349 = vmatprep.subr.mxu0 0.0
    %2350 = vmatpush1.msra.mxu0 0.0
    %2351 = vmatprep.subr.mxu0 0.0
    %2352 = vmatpush1.msra.mxu0 0.0
    %2353 = vmatprep.subr.mxu0 0.0
    %2354 = vmatpush1.msra.mxu0 0.0
    %2355 = vmatprep.subr.mxu0 0.0
    %2356 = vmatpush1.msra.mxu0 0.0
    %2357 = vmatprep.subr.mxu0 0.0
    %2358 = vmatpush1.msra.mxu0 0.0
    %2359 = vmatprep.subr.mxu0 0.0
    %2360 = vmatpush1.msra.mxu0 0.0
    %2361 = vmatprep.subr.mxu0 0.0
    %2362 = vmatpush1.msra.mxu0 0.0
    %2363 = vmatprep.subr.mxu0 0.0
    %2364 = vmatpush1.msra.mxu0 0.0
    %2365 = vmatprep.subr.mxu0 0.0
    %2366 = vmatpush1.msra.mxu0 0.0
    %2367 = vmatprep.subr.mxu0 0.0
    %2368 = vmatpush1.msra.mxu0 0.0
    %2369 = vmatprep.subr.mxu0 0.0
    %2370 = vmatpush1.msra.mxu0 0.0
    %2371 = vmatprep.subr.mxu0 0.0
    %2372 = vmatpush1.msra.mxu0 0.0
    %2373 = vmatprep.subr.mxu0 0.0
    %2374 = vmatpush1.msra.mxu0 0.0
    %2375 = vmatprep.subr.mxu0 0.0
    %2376 = vmatpush1.msra.mxu0 0.0
    %2377 = vmatprep.subr.mxu0 0.0
    %2378 = vmatpush1.msra.mxu0 0.0
    %2379 = vmatprep.subr.mxu0 0.0
    %2380 = vmatpush1.msra.mxu0 0.0
    %2381 = vmatprep.subr.mxu0 0.0
    %2382 = vmatpush1.msra.mxu0 0.0
    %2383 = vmatprep.subr.mxu0 0.0
    %2384 = vmatpush1.msra.mxu0 0.0
    %2385 = vmatprep.subr.mxu0 0.0
    %2386 = vmatpush1.msra.mxu0 0.0
    %2387 = vmatprep.subr.mxu0 0.0
    %2388 = vmatpush1.msra.mxu0 0.0
    %2389 = vmatprep.subr.mxu0 0.0
    %2390 = vmatpush1.msra.mxu0 0.0
    %2391 = vmatprep.subr.mxu0 0.0
    %2392 = vmatpush1.msra.mxu0 0.0
    %2393 = vmatprep.subr.mxu0 0.0
    %2394 = vmatpush1.msra.mxu0 0.0
    %2395 = vmatprep.subr.mxu0 0.0
    %2396 = vmatpush1.msra.mxu0 0.0
    %2397 = vmatprep.subr.mxu0 0.0
    %2398 = vmatpush1.msra.mxu0 0.0
    %2399 = vmatprep.subr.mxu0 0.0
    %2400 = vmatpush1.msra.mxu0 0.0
    %2401 = vmatprep.subr.mxu0 0.0
    %2402 = vmatpush1.msra.mxu0 0.0
    %2403 = vmatprep.subr.mxu0 0.0
    %2404 = vmatpush1.msra.mxu0 0.0
    %2405 = vmatprep.subr.mxu0 0.0
    %2406 = vmatpush1.msra.mxu0 0.0
    %2407 = vmatprep.subr.mxu0 0.0
    %2408 = vmatpush1.msra.mxu0 0.0
    %2409 = vmatprep.mubr.f32.mxu0 0.0
    %2410 = vmatmul.mubr.f32.gmra.mrb[0].mxu0 %v2340
    %v2411 = vpop.f32.mrb[0].mxu0
    %v2412 = vadd.f32 0.0, %v2411
    %v2413 = vpop.f32.mrb[0].mxu0
    %2414 = vmatprep.mubr.f32.mxu0 0.0
    %2415 = vmatmul.mubr.f32.gmra.mrb[0].mxu0 %v2343
    %v2416 = vpop.f32.mrb[0].mxu0
    %v2417 = vadd.f32 0.0, %v2416
    %v2418 = vpop.f32.mrb[0].mxu0
    %2419 = vdwg.mxu0
    %v2420 = vadd.f32 %v2256, %v2412
    %v2421 = vadd.f32 %v2257, %v2417
    %v2422 = vadd.f32 %v2420, %v1219
    %v2423 = vadd.f32 %v2421, %v1219
    %v2424 = vxor.u32 %v2422, 2147483648
    %v2425 = vxor.u32 %v2423, 2147483648
    %v2426 = vmul.f32 %v2424, 1.442695
    %v2427 = vpow.pop %v2426
    %v2428 = vmul.f32 %v2425, 1.442695
    %v2429 = vpow.pop %v2428
    %v2430 = vadd.f32 %v2427, 1.0
    %v2431 = vadd.f32 %v2429, 1.0
    %v2432 = vrcp.pop %v2430
    %v2433 = vmul.f32 1.0, %v2432
    %v2434 = vrcp.pop %v2431
    %v2435 = vmul.f32 1.0, %v2434
    %s2436 = scalar_lea.vmem [#allocation3], 16
    %2437 = vst.msk [vmem:[%s2436] sm:$0xff] %vm53, %v2433
    %2438 = vst.msk [vmem:[%s2436 + $0x8] sm:$0xff] %vm53, %v2435
    // Predicated region
    $region18: #{tpu_custom_call.1} parent=1 // pred_check
      _
    $region19: #{tpu_custom_call.1} parent=1 // pred_check_branch
      %2440 = sbr.rel (0) target = $region21
    $region20: #{tpu_custom_call.1} parent=1 // pred_region
      %s2442 = ssub.s32 512, 512
      %2443 = vsyncadd [#allocation4], %s2442
      %s2444 = sshll.u32 [#allocation3], 4
      %s2445 = int_to_ptr.vmem [resolvable:$true] %s2444
      %2450 = dma.vmem_to_hbm [thread:$0]  %s2445, 512, %s4, [#allocation4], 128, 128, 8
    $region21: #{tpu_custom_call.1} parent=1 // pred_fallthru
      _
    // Predicated region
    $region22: #{tpu_custom_call.1} parent=1 // pred_check
      _
    $region23: #{tpu_custom_call.1} parent=1 // pred_check_branch
      %2452 = sbr.rel (0) target = $region25
    $region24: #{tpu_custom_call.1} parent=1 // pred_region
      %2453 = dma.done [#allocation4], 512
    $region25: #{tpu_custom_call.1} parent=1 // pred_fallthru
      _
    %2454 = vsyncpa [#allocation4], 1

</llo_original>
